<compile_context>
chip_gen: v7x
topology: tpu7x:2x2x1
jax: 0.10.0
libtpu: 0.0.40
codegen_flags: <defaults>
</compile_context>

<pallas_src>
import functools

import jax
import jax.numpy as jnp
from jax.experimental import pallas as pl
from jax.experimental.pallas import tpu as pltpu


# Model constants (match the PyTorch module)
C = 256           # conv channel count
K1, S1 = 80, 4    # conv1 kernel / stride
K1P = 128         # conv1 kernel zero-padded to a full lane tile
K2 = 3            # conv2 kernel
POOL = 4          # MaxPool1d(4)
NCLS = 10         # fc output classes
NCLS_PAD = 128    # lane-dense padded fc output width
EPS = 1e-5        # BatchNorm eps
BN_CHUNK = 32     # rows per BatchNorm reduction chunk (bounds live vregs)


def _im2col_geometry(n, length):
    """Static im2col geometry shared by the wrapper and the kernel."""
    l1 = (length - K1) // S1 + 1          # conv1 output length
    grp = max(1, 8 // n)                  # positions per group -> 8-row stores
    n_grp = -(-l1 // grp)                 # number of (8, 128) patch tiles
    w8 = S1 * grp * (n_grp - 1) + K1P     # width of the shifted-signal slab
    return l1, grp, n_grp, w8


# ----------------------------------------------------------------------------
# Fused Pallas kernel: the entire forward pass, VMEM resident.
# Activations are kept as flat 2-D (rows, C) slabs, rows ordered (position, batch).
# ----------------------------------------------------------------------------
def _m3_fused_kernel(x8_ref, w1_ref, g1_ref, be1_ref,
                     w2_hbm, g2_ref, be2_ref, wfc_ref, bfc_ref,
                     o_ref, patch_ref, w2_vmem, dma_sem, *, l1, n_batch):
    N = n_batch
    rpg = x8_ref.shape[0]                 # rows per im2col group (8 at N=2)
    grp = rpg // N                        # positions per group (4 at N=2)
    n_grp = -(-l1 // grp)
    p1 = l1 // POOL                       # positions after maxpool1
    l3 = p1 - (K2 - 1)                    # conv2 output length
    p2 = l3 // POOL                       # positions after maxpool2

    # -- Kick off the conv2 weight fetch; it overlaps conv1 + BN1 + maxpool1.
    w2_copy = pltpu.make_async_copy(w2_hbm, w2_vmem, dma_sem)
    w2_copy.start()

    # ---- conv1 im2col: n_grp aligned (8,128) loads from the shifted slab and
    # n_grp unmasked full-tile stores.  patch row l*N+n = x[n, S1*l : S1*l+128];
    # columns 80..127 hit the zero rows of w1, contributing exactly 0.
    for g in range(n_grp):
        off = S1 * grp * g
        patch_ref[rpg * g: rpg * (g + 1), :] = x8_ref[:, off: off + K1P]

    # ---- conv1 matmul (bias omitted: exactly cancelled by BN mean subtraction)
    h1 = jnp.dot(patch_ref[0: l1 * N, :], w1_ref[...],
                 preferred_element_type=jnp.float32)        # (l1*N, C)

    # ---- BatchNorm (training mode, biased variance): two-pass, chunked rows.
    def bn_stats(y):
        rows = y.shape[0]
        s = jnp.zeros((1, C), jnp.float32)
        for r0 in range(0, rows, BN_CHUNK):
            s = s + jnp.sum(y[r0: min(r0 + BN_CHUNK, rows)], axis=0,
                            keepdims=True)
        mean = s * (1.0 / rows)
        v = jnp.zeros((1, C), jnp.float32)
        for r0 in range(0, rows, BN_CHUNK):
            d = y[r0: min(r0 + BN_CHUNK, rows)] - mean
            v = v + jnp.sum(d * d, axis=0, keepdims=True)
        return mean, jax.lax.rsqrt(v * (1.0 / rows) + EPS)

    # ---- MaxPool1d(4) on the flat (pos, batch)-ordered slab: the second-minor
    # dim stays a full 8-row sublane tile; pool offsets are elementwise maxima.
    def maxpool4(y, p_out):
        grp_v = y.reshape(p_out, POOL * N, C)
        m = grp_v[:, 0:N, :]
        for j in range(1, POOL):
            m = jnp.maximum(m, grp_v[:, j * N:(j + 1) * N, :])
        return m.reshape(p_out * N, C)

    mean1, rstd1 = bn_stats(h1)                             # stats over ALL rows
    ru1 = p1 * POOL * N                                     # rows kept by maxpool
    y1 = (h1[0:ru1] - mean1) * (rstd1 * g1_ref[...]) + be1_ref[...]
    hp1 = maxpool4(y1, p1)                                  # (p1*N, C)

    # ---- conv2 as ONE K = K2*C dot: lane-concat the 3 contiguous row windows.
    lhs = jnp.concatenate([hp1[k * N:(k + l3) * N, :] for k in range(K2)],
                          axis=1)                           # (l3*N, K2*C)
    w2_copy.wait()                                          # weights now in VMEM
    h2 = jnp.dot(lhs, w2_vmem[...], preferred_element_type=jnp.float32)

    mean2, rstd2 = bn_stats(h2)
    ru2 = p2 * POOL * N
    y2 = (h2[0:ru2] - mean2) * (rstd2 * g2_ref[...]) + be2_ref[...]
    hp2 = maxpool4(y2, p2)                                  # (p2*N, C)

    # ---- AdaptiveAvgPool1d(1): mean over the p2 surviving positions.
    acc = hp2[0:N, :]
    for p in range(1, p2):
        acc = acc + hp2[p * N:(p + 1) * N, :]
    pooled = acc * (1.0 / p2)                               # (N, C)

    # ---- Linear(C, 10) into a 128-lane padded slab (unmasked stores).
    o_ref[...] = jnp.dot(pooled, wfc_ref[...],
                         preferred_element_type=jnp.float32) + bfc_ref[...]


def _full_spec(shape):
    return pl.BlockSpec(shape, lambda i, _s=shape: (0,) * len(_s))


@jax.jit
def m3_forward(p, x):
    """x: (N, 1, L) float32 (PyTorch layout). Returns (N, 10) logits."""
    N, cin, L = x.shape
    assert cin == 1
    l1, grp, n_grp, w8 = _im2col_geometry(N, L)

    # Pre-build `grp` stride-shifted copies of the signal (rows = (tap, batch))
    # so the in-kernel im2col is pure aligned slice loads / full-tile stores.
    xp = jnp.zeros((N, w8 + S1 * (grp - 1)), jnp.float32).at[:, :L].set(x[:, 0, :])
    x8 = jnp.stack([xp[:, S1 * j: S1 * j + w8] for j in range(grp)], axis=0)
    x8 = x8.reshape(grp * N, w8)

    kernel = functools.partial(_m3_fused_kernel, l1=l1, n_batch=N)
    out_pad = pl.pallas_call(
        kernel,
        out_shape=jax.ShapeDtypeStruct((N, NCLS_PAD), jnp.float32),
        grid=(1,),
        in_specs=[
            _full_spec((grp * N, w8)),          # shifted signal slab
            _full_spec((K1P, C)),               # w1, K zero-padded to 128
            _full_spec((1, C)),                 # gamma1
            _full_spec((1, C)),                 # beta1
            pl.BlockSpec(memory_space=pl.ANY),  # w2 (K2*C, C) stays in HBM
            _full_spec((1, C)),                 # gamma2
            _full_spec((1, C)),                 # beta2
            _full_spec((C, NCLS_PAD)),          # fc weight, lane-dense padded
            _full_spec((1, NCLS_PAD)),          # fc bias, padded
        ],
        out_specs=_full_spec((N, NCLS_PAD)),
        scratch_shapes=[
            pltpu.VMEM((grp * N * n_grp, K1P), jnp.float32),  # conv1 patches
            pltpu.VMEM((K2 * C, C), jnp.float32),             # conv2 weight buffer
            pltpu.SemaphoreType.DMA(()),                      # conv2 DMA semaphore
        ],
        compiler_params=pltpu.CompilerParams(
            dimension_semantics=("arbitrary",)),
        cost_estimate=pl.CostEstimate(flops=13_000_000, transcendentals=0,
                                      bytes_accessed=1_100_000),
    )(x8, p["w1k"], p["g1"], p["be1"], p["w2k"], p["g2"], p["be2"],
      p["wfc_pad"], p["bfc_pad"])
    return out_pad[:, :NCLS]


# ----------------------------------------------------------------------------
# Parameters (deterministic synthetic init; shapes match the PyTorch module)
# ----------------------------------------------------------------------------
def init_params(key):
    k1, k2, k3, k4, k5, k6 = jax.random.split(key, 6)
    p = {}
    p["w1"] = jax.random.normal(k1, (C, 1, K1), jnp.float32) / jnp.sqrt(float(K1))
    p["b1"] = jax.random.normal(k2, (C,), jnp.float32) * 0.01
    p["g1"] = jnp.ones((C,), jnp.float32)      # BatchNorm1d weight init
    p["be1"] = jnp.zeros((C,), jnp.float32)    # BatchNorm1d bias init
    p["w2"] = jax.random.normal(k3, (C, C, K2), jnp.float32) / jnp.sqrt(float(C * K2))
    p["b2"] = jax.random.normal(k4, (C,), jnp.float32) * 0.01
    p["g2"] = jnp.ones((C,), jnp.float32)
    p["be2"] = jnp.zeros((C,), jnp.float32)
    p["wfc"] = jax.random.normal(k5, (NCLS, C), jnp.float32) / jnp.sqrt(float(C))
    p["bfc"] = jax.random.normal(k6, (NCLS,), jnp.float32) * 0.01
    return p


def prepare_params(p):
    """Hoisted weight-layout transforms: kernel sees lane-dense (K, N) weights.
    Conv biases are intentionally NOT passed: they cancel under training-mode BN."""
    kp = {}
    w1 = p["w1"].reshape(C, K1).T                                         # (80, C)
    kp["w1k"] = jnp.zeros((K1P, C), jnp.float32).at[:K1, :].set(w1)       # (128, C)
    kp["w2k"] = jnp.transpose(p["w2"], (2, 1, 0)).reshape(K2 * C, C)      # (768, C)
    kp["wfc_pad"] = jnp.zeros((C, NCLS_PAD), jnp.float32).at[:, :NCLS].set(p["wfc"].T)
    kp["bfc_pad"] = jnp.zeros((1, NCLS_PAD), jnp.float32).at[:, :NCLS].set(p["bfc"])
    for name in ("g1", "be1", "g2", "be2"):
        kp[name] = p[name].reshape(1, C)
    return kp


# ----------------------------------------------------------------------------
# Pure-JAX reference with the module's exact math (correctness check).
# Includes the conv biases the kernel drops (they cancel under training BN).
# ----------------------------------------------------------------------------
def m3_reference(p, x):
    N, _, L = x.shape
    L1 = (L - K1) // S1 + 1
    idx1 = jnp.arange(L1)[:, None] * S1 + jnp.arange(K1)[None, :]
    a1 = x[:, 0, :][:, idx1].reshape(N * L1, K1)
    h = (a1 @ p["w1"].reshape(C, K1).T + p["b1"]).reshape(N, L1, C)

    def bn_mp(h, g, b):
        mean = h.mean(axis=(0, 1), keepdims=True)
        var = ((h - mean) ** 2).mean(axis=(0, 1), keepdims=True)
        y = (h - mean) / jnp.sqrt(var + EPS) * g + b
        n, l, c = y.shape
        lp = l // POOL
        return y[:, : lp * POOL, :].reshape(n, lp, POOL, c).max(axis=2)

    h = bn_mp(h, p["g1"], p["be1"])
    L3 = h.shape[1] - (K2 - 1)
    idx2 = jnp.arange(L3)[:, None] + jnp.arange(K2)[None, :]
    a2 = h[:, idx2, :].reshape(N * L3, K2 * C)
    w2k = jnp.transpose(p["w2"], (2, 1, 0)).reshape(K2 * C, C)
    h = (a2 @ w2k + p["b2"]).reshape(N, L3, C)
    h = bn_mp(h, p["g2"], p["be2"])
    return h.mean(axis=1) @ p["wfc"].T + p["bfc"]


if __name__ == "__main__":
    key = jax.random.PRNGKey(0)
    pkey, xkey = jax.random.split(key)
    params = init_params(pkey)
    kparams = prepare_params(params)
    # Input matching nn.Conv1d(1, 256, 80, 4): (batch=2, channels=1, length=256)
    x = jax.random.normal(xkey, (2, 1, 256), jnp.float32)

    out = jax.block_until_ready(m3_forward(kparams, x))

    ref = m3_reference(params, x)
    assert out.shape == (2, 10)
    assert bool(jnp.all(jnp.isfinite(out)))
    assert bool(jnp.allclose(out, ref, atol=1e-3, rtol=1e-3))
    print("KERNEL_OK")
</pallas_src>

<mosaic_0001>
module attributes {stable_mosaic.version = 11 : i64} {
  func.func @_m3_fused_kernel(%arg0: i32, %arg1: memref<8x304xf32, #tpu.memory_space<vmem>>, %arg2: memref<128x256xf32, #tpu.memory_space<vmem>>, %arg3: memref<1x256xf32, #tpu.memory_space<vmem>>, %arg4: memref<1x256xf32, #tpu.memory_space<vmem>>, %arg5: memref<768x256xf32, #tpu.memory_space<any>>, %arg6: memref<1x256xf32, #tpu.memory_space<vmem>>, %arg7: memref<1x256xf32, #tpu.memory_space<vmem>>, %arg8: memref<256x128xf32, #tpu.memory_space<vmem>>, %arg9: memref<1x128xf32, #tpu.memory_space<vmem>>, %arg10: memref<2x128xf32, #tpu.memory_space<vmem>>, %arg11: memref<96x128xf32, #tpu.memory_space<vmem>>, %arg12: memref<768x256xf32, #tpu.memory_space<vmem>>, %arg13: memref<!tpu.dma_semaphore, #tpu.memory_space<semaphore_mem>>) attributes {dimension_semantics = [#tpu.dimension_semantics<arbitrary>], iteration_bounds = array<i64: 1>, scalar_prefetch = 0 : i64, scratch_operands = 3 : i64, tpu.core_type = #tpu.core_type<tc>, window_params = [{pipeline_mode = #tpu.pipeline_mode<synchronous>, transform_indices = @transform_0, window_bounds = array<i64: 8, 304>}, {pipeline_mode = #tpu.pipeline_mode<synchronous>, transform_indices = @transform_1, window_bounds = array<i64: 128, 256>}, {pipeline_mode = #tpu.pipeline_mode<synchronous>, transform_indices = @transform_2, window_bounds = array<i64: 1, 256>}, {pipeline_mode = #tpu.pipeline_mode<synchronous>, transform_indices = @transform_3, window_bounds = array<i64: 1, 256>}, {}, {pipeline_mode = #tpu.pipeline_mode<synchronous>, transform_indices = @transform_5, window_bounds = array<i64: 1, 256>}, {pipeline_mode = #tpu.pipeline_mode<synchronous>, transform_indices = @transform_6, window_bounds = array<i64: 1, 256>}, {pipeline_mode = #tpu.pipeline_mode<synchronous>, transform_indices = @transform_7, window_bounds = array<i64: 256, 128>}, {pipeline_mode = #tpu.pipeline_mode<synchronous>, transform_indices = @transform_8, window_bounds = array<i64: 1, 128>}, {pipeline_mode = #tpu.pipeline_mode<synchronous>, transform_indices = @transform_9, window_bounds = array<i64: 2, 128>}]} {
    tpu.enqueue_dma source(%arg5 : memref<768x256xf32, #tpu.memory_space<any>>) target(%arg12 : memref<768x256xf32, #tpu.memory_space<vmem>>) target_semaphore(%arg13 : memref<!tpu.dma_semaphore, #tpu.memory_space<semaphore_mem>>)
    %c0 = arith.constant 0 : index
    %c0_0 = arith.constant 0 : index
    %0 = vector.load %arg1[%c0, %c0_0] : memref<8x304xf32, #tpu.memory_space<vmem>>, vector<8x128xf32>
    %c0_1 = arith.constant 0 : index
    %c0_2 = arith.constant 0 : index
    %1 = vector.load %arg11[%c0_1, %c0_2] : memref<96x128xf32, #tpu.memory_space<vmem>>, vector<8x128xf32>
    tpu.vector_store %arg11[%c0_1, %c0_2], %0 {strides = array<i32>} : memref<96x128xf32, #tpu.memory_space<vmem>>, vector<8x128xf32>,
    %c0_3 = arith.constant 0 : index
    %c16 = arith.constant 16 : index
    %2 = vector.load %arg1[%c0_3, %c16] : memref<8x304xf32, #tpu.memory_space<vmem>>, vector<8x128xf32>
    %c8 = arith.constant 8 : index
    %c0_4 = arith.constant 0 : index
    %3 = vector.load %arg11[%c8, %c0_4] : memref<96x128xf32, #tpu.memory_space<vmem>>, vector<8x128xf32>
    tpu.vector_store %arg11[%c8, %c0_4], %2 {strides = array<i32>} : memref<96x128xf32, #tpu.memory_space<vmem>>, vector<8x128xf32>,
    %c0_5 = arith.constant 0 : index
    %c32 = arith.constant 32 : index
    %4 = vector.load %arg1[%c0_5, %c32] : memref<8x304xf32, #tpu.memory_space<vmem>>, vector<8x128xf32>
    %c16_6 = arith.constant 16 : index
    %c0_7 = arith.constant 0 : index
    %5 = vector.load %arg11[%c16_6, %c0_7] : memref<96x128xf32, #tpu.memory_space<vmem>>, vector<8x128xf32>
    tpu.vector_store %arg11[%c16_6, %c0_7], %4 {strides = array<i32>} : memref<96x128xf32, #tpu.memory_space<vmem>>, vector<8x128xf32>,
    %c0_8 = arith.constant 0 : index
    %c48 = arith.constant 48 : index
    %6 = vector.load %arg1[%c0_8, %c48] : memref<8x304xf32, #tpu.memory_space<vmem>>, vector<8x128xf32>
    %c24 = arith.constant 24 : index
    %c0_9 = arith.constant 0 : index
    %7 = vector.load %arg11[%c24, %c0_9] : memref<96x128xf32, #tpu.memory_space<vmem>>, vector<8x128xf32>
    tpu.vector_store %arg11[%c24, %c0_9], %6 {strides = array<i32>} : memref<96x128xf32, #tpu.memory_space<vmem>>, vector<8x128xf32>,
    %c0_10 = arith.constant 0 : index
    %c64 = arith.constant 64 : index
    %8 = vector.load %arg1[%c0_10, %c64] : memref<8x304xf32, #tpu.memory_space<vmem>>, vector<8x128xf32>
    %c32_11 = arith.constant 32 : index
    %c0_12 = arith.constant 0 : index
    %9 = vector.load %arg11[%c32_11, %c0_12] : memref<96x128xf32, #tpu.memory_space<vmem>>, vector<8x128xf32>
    tpu.vector_store %arg11[%c32_11, %c0_12], %8 {strides = array<i32>} : memref<96x128xf32, #tpu.memory_space<vmem>>, vector<8x128xf32>,
    %c0_13 = arith.constant 0 : index
    %c80 = arith.constant 80 : index
    %10 = vector.load %arg1[%c0_13, %c80] : memref<8x304xf32, #tpu.memory_space<vmem>>, vector<8x128xf32>
    %c40 = arith.constant 40 : index
    %c0_14 = arith.constant 0 : index
    %11 = vector.load %arg11[%c40, %c0_14] : memref<96x128xf32, #tpu.memory_space<vmem>>, vector<8x128xf32>
    tpu.vector_store %arg11[%c40, %c0_14], %10 {strides = array<i32>} : memref<96x128xf32, #tpu.memory_space<vmem>>, vector<8x128xf32>,
    %c0_15 = arith.constant 0 : index
    %c96 = arith.constant 96 : index
    %12 = vector.load %arg1[%c0_15, %c96] : memref<8x304xf32, #tpu.memory_space<vmem>>, vector<8x128xf32>
    %c48_16 = arith.constant 48 : index
    %c0_17 = arith.constant 0 : index
    %13 = vector.load %arg11[%c48_16, %c0_17] : memref<96x128xf32, #tpu.memory_space<vmem>>, vector<8x128xf32>
    tpu.vector_store %arg11[%c48_16, %c0_17], %12 {strides = array<i32>} : memref<96x128xf32, #tpu.memory_space<vmem>>, vector<8x128xf32>,
    %c0_18 = arith.constant 0 : index
    %c112 = arith.constant 112 : index
    %14 = vector.load %arg1[%c0_18, %c112] : memref<8x304xf32, #tpu.memory_space<vmem>>, vector<8x128xf32>
    %c56 = arith.constant 56 : index
    %c0_19 = arith.constant 0 : index
    %15 = vector.load %arg11[%c56, %c0_19] : memref<96x128xf32, #tpu.memory_space<vmem>>, vector<8x128xf32>
    tpu.vector_store %arg11[%c56, %c0_19], %14 {strides = array<i32>} : memref<96x128xf32, #tpu.memory_space<vmem>>, vector<8x128xf32>,
    %c0_20 = arith.constant 0 : index
    %c128 = arith.constant 128 : index
    %16 = vector.load %arg1[%c0_20, %c128] : memref<8x304xf32, #tpu.memory_space<vmem>>, vector<8x128xf32>
    %c64_21 = arith.constant 64 : index
    %c0_22 = arith.constant 0 : index
    %17 = vector.load %arg11[%c64_21, %c0_22] : memref<96x128xf32, #tpu.memory_space<vmem>>, vector<8x128xf32>
    tpu.vector_store %arg11[%c64_21, %c0_22], %16 {strides = array<i32>} : memref<96x128xf32, #tpu.memory_space<vmem>>, vector<8x128xf32>,
    %c0_23 = arith.constant 0 : index
    %c144 = arith.constant 144 : index
    %18 = vector.load %arg1[%c0_23, %c144] : memref<8x304xf32, #tpu.memory_space<vmem>>, vector<8x128xf32>
    %c72 = arith.constant 72 : index
    %c0_24 = arith.constant 0 : index
    %19 = vector.load %arg11[%c72, %c0_24] : memref<96x128xf32, #tpu.memory_space<vmem>>, vector<8x128xf32>
    tpu.vector_store %arg11[%c72, %c0_24], %18 {strides = array<i32>} : memref<96x128xf32, #tpu.memory_space<vmem>>, vector<8x128xf32>,
    %c0_25 = arith.constant 0 : index
    %c160 = arith.constant 160 : index
    %20 = vector.load %arg1[%c0_25, %c160] : memref<8x304xf32, #tpu.memory_space<vmem>>, vector<8x128xf32>
    %c80_26 = arith.constant 80 : index
    %c0_27 = arith.constant 0 : index
    %21 = vector.load %arg11[%c80_26, %c0_27] : memref<96x128xf32, #tpu.memory_space<vmem>>, vector<8x128xf32>
    tpu.vector_store %arg11[%c80_26, %c0_27], %20 {strides = array<i32>} : memref<96x128xf32, #tpu.memory_space<vmem>>, vector<8x128xf32>,
    %c0_28 = arith.constant 0 : index
    %c176 = arith.constant 176 : index
    %22 = vector.load %arg1[%c0_28, %c176] : memref<8x304xf32, #tpu.memory_space<vmem>>, vector<8x128xf32>
    %c88 = arith.constant 88 : index
    %c0_29 = arith.constant 0 : index
    %23 = vector.load %arg11[%c88, %c0_29] : memref<96x128xf32, #tpu.memory_space<vmem>>, vector<8x128xf32>
    tpu.vector_store %arg11[%c88, %c0_29], %22 {strides = array<i32>} : memref<96x128xf32, #tpu.memory_space<vmem>>, vector<8x128xf32>,
    %c0_30 = arith.constant 0 : index
    %c0_31 = arith.constant 0 : index
    %24 = vector.load %arg11[%c0_30, %c0_31] : memref<96x128xf32, #tpu.memory_space<vmem>>, vector<90x128xf32>
    %c0_32 = arith.constant 0 : index
    %c0_33 = arith.constant 0 : index
    %25 = vector.load %arg2[%c0_32, %c0_33] : memref<128x256xf32, #tpu.memory_space<vmem>>, vector<128x256xf32>
    %cst = arith.constant dense<0.000000e+00> : vector<90x256xf32>
    %26 = tpu.matmul %24, %25, %cst {dimension_numbers = #tpu.dot_dimension_numbers<[1], [0], [0], [1], [0, 0, 1, 1], [], []>} : vector<90x128xf32>, vector<128x256xf32>, vector<90x256xf32> -> vector<90x256xf32>
    %cst_34 = arith.constant 0.000000e+00 : f32
    %27 = vector.broadcast %cst_34 : f32 to vector<1x256xf32>
    %28 = vector.extract_strided_slice %26 {offsets = [0, 0], sizes = [32, 256], strides = [1, 1]} : vector<90x256xf32> to vector<32x256xf32>
    %cst_35 = arith.constant dense<0.000000e+00> : vector<256xf32>
    %29 = vector.multi_reduction <add>, %28, %cst_35 [0] : vector<32x256xf32> to vector<256xf32>
    %30 = vector.shape_cast %29 : vector<256xf32> to vector<1x256xf32>
    %31 = arith.addf %27, %30 : vector<1x256xf32>
    %32 = vector.extract_strided_slice %26 {offsets = [32, 0], sizes = [32, 256], strides = [1, 1]} : vector<90x256xf32> to vector<32x256xf32>
    %cst_36 = arith.constant dense<0.000000e+00> : vector<256xf32>
    %33 = vector.multi_reduction <add>, %32, %cst_36 [0] : vector<32x256xf32> to vector<256xf32>
    %34 = vector.shape_cast %33 : vector<256xf32> to vector<1x256xf32>
    %35 = arith.addf %31, %34 : vector<1x256xf32>
    %36 = vector.extract_strided_slice %26 {offsets = [64, 0], sizes = [26, 256], strides = [1, 1]} : vector<90x256xf32> to vector<26x256xf32>
    %cst_37 = arith.constant dense<0.000000e+00> : vector<256xf32>
    %37 = vector.multi_reduction <add>, %36, %cst_37 [0] : vector<26x256xf32> to vector<256xf32>
    %38 = vector.shape_cast %37 : vector<256xf32> to vector<1x256xf32>
    %39 = arith.addf %35, %38 : vector<1x256xf32>
    %cst_38 = arith.constant 0.0111111114 : f32
    %40 = vector.broadcast %cst_38 : f32 to vector<1x256xf32>
    %41 = arith.mulf %39, %40 : vector<1x256xf32>
    %cst_39 = arith.constant 0.000000e+00 : f32
    %42 = vector.broadcast %cst_39 : f32 to vector<1x256xf32>
    %43 = vector.extract_strided_slice %26 {offsets = [0, 0], sizes = [32, 256], strides = [1, 1]} : vector<90x256xf32> to vector<32x256xf32>
    %44 = vector.broadcast %41 : vector<1x256xf32> to vector<32x256xf32>
    %45 = arith.subf %43, %44 : vector<32x256xf32>
    %46 = arith.mulf %45, %45 : vector<32x256xf32>
    %cst_40 = arith.constant dense<0.000000e+00> : vector<256xf32>
    %47 = vector.multi_reduction <add>, %46, %cst_40 [0] : vector<32x256xf32> to vector<256xf32>
    %48 = vector.shape_cast %47 : vector<256xf32> to vector<1x256xf32>
    %49 = arith.addf %42, %48 : vector<1x256xf32>
    %50 = vector.extract_strided_slice %26 {offsets = [32, 0], sizes = [32, 256], strides = [1, 1]} : vector<90x256xf32> to vector<32x256xf32>
    %51 = vector.broadcast %41 : vector<1x256xf32> to vector<32x256xf32>
    %52 = arith.subf %50, %51 : vector<32x256xf32>
    %53 = arith.mulf %52, %52 : vector<32x256xf32>
    %cst_41 = arith.constant dense<0.000000e+00> : vector<256xf32>
    %54 = vector.multi_reduction <add>, %53, %cst_41 [0] : vector<32x256xf32> to vector<256xf32>
    %55 = vector.shape_cast %54 : vector<256xf32> to vector<1x256xf32>
    %56 = arith.addf %49, %55 : vector<1x256xf32>
    %57 = vector.extract_strided_slice %26 {offsets = [64, 0], sizes = [26, 256], strides = [1, 1]} : vector<90x256xf32> to vector<26x256xf32>
    %58 = vector.broadcast %41 : vector<1x256xf32> to vector<26x256xf32>
    %59 = arith.subf %57, %58 : vector<26x256xf32>
    %60 = arith.mulf %59, %59 : vector<26x256xf32>
    %cst_42 = arith.constant dense<0.000000e+00> : vector<256xf32>
    %61 = vector.multi_reduction <add>, %60, %cst_42 [0] : vector<26x256xf32> to vector<256xf32>
    %62 = vector.shape_cast %61 : vector<256xf32> to vector<1x256xf32>
    %63 = arith.addf %56, %62 : vector<1x256xf32>
    %cst_43 = arith.constant 0.0111111114 : f32
    %64 = vector.broadcast %cst_43 : f32 to vector<1x256xf32>
    %65 = arith.mulf %63, %64 : vector<1x256xf32>
    %cst_44 = arith.constant 9.99999974E-6 : f32
    %66 = vector.broadcast %cst_44 : f32 to vector<1x256xf32>
    %67 = arith.addf %65, %66 : vector<1x256xf32>
    %68 = math.rsqrt %67 : vector<1x256xf32>
    %69 = vector.extract_strided_slice %26 {offsets = [0, 0], sizes = [88, 256], strides = [1, 1]} : vector<90x256xf32> to vector<88x256xf32>
    %70 = vector.broadcast %41 : vector<1x256xf32> to vector<88x256xf32>
    %71 = arith.subf %69, %70 : vector<88x256xf32>
    %c0_45 = arith.constant 0 : index
    %c0_46 = arith.constant 0 : index
    %72 = vector.load %arg3[%c0_45, %c0_46] : memref<1x256xf32, #tpu.memory_space<vmem>>, vector<1x256xf32>
    %73 = arith.mulf %68, %72 : vector<1x256xf32>
    %74 = vector.broadcast %73 : vector<1x256xf32> to vector<88x256xf32>
    %75 = arith.mulf %71, %74 : vector<88x256xf32>
    %c0_47 = arith.constant 0 : index
    %c0_48 = arith.constant 0 : index
    %76 = vector.load %arg4[%c0_47, %c0_48] : memref<1x256xf32, #tpu.memory_space<vmem>>, vector<1x256xf32>
    %77 = vector.broadcast %76 : vector<1x256xf32> to vector<88x256xf32>
    %78 = arith.addf %75, %77 : vector<88x256xf32>
    %79 = vector.shape_cast %78 : vector<88x256xf32> to vector<11x8x256xf32>
    %80 = vector.extract_strided_slice %79 {offsets = [0, 0, 0], sizes = [11, 2, 256], strides = [1, 1, 1]} : vector<11x8x256xf32> to vector<11x2x256xf32>
    %81 = vector.extract_strided_slice %79 {offsets = [0, 2, 0], sizes = [11, 2, 256], strides = [1, 1, 1]} : vector<11x8x256xf32> to vector<11x2x256xf32>
    %82 = arith.maximumf %80, %81 : vector<11x2x256xf32>
    %83 = vector.extract_strided_slice %79 {offsets = [0, 4, 0], sizes = [11, 2, 256], strides = [1, 1, 1]} : vector<11x8x256xf32> to vector<11x2x256xf32>
    %84 = arith.maximumf %82, %83 : vector<11x2x256xf32>
    %85 = vector.extract_strided_slice %79 {offsets = [0, 6, 0], sizes = [11, 2, 256], strides = [1, 1, 1]} : vector<11x8x256xf32> to vector<11x2x256xf32>
    %86 = arith.maximumf %84, %85 : vector<11x2x256xf32>
    %87 = vector.shape_cast %86 : vector<11x2x256xf32> to vector<22x256xf32>
    %88 = vector.extract_strided_slice %87 {offsets = [0, 0], sizes = [18, 256], strides = [1, 1]} : vector<22x256xf32> to vector<18x256xf32>
    %89 = vector.extract_strided_slice %87 {offsets = [2, 0], sizes = [18, 256], strides = [1, 1]} : vector<22x256xf32> to vector<18x256xf32>
    %90 = vector.extract_strided_slice %87 {offsets = [4, 0], sizes = [18, 256], strides = [1, 1]} : vector<22x256xf32> to vector<18x256xf32>
    %91 = tpu.concatenate %88, %89, %90 in 1 : vector<18x256xf32>, vector<18x256xf32>, vector<18x256xf32> -> vector<18x768xf32>
    tpu.wait_dma2 semaphore(%arg13 : memref<!tpu.dma_semaphore, #tpu.memory_space<semaphore_mem>>) src(%arg5 : memref<768x256xf32, #tpu.memory_space<any>>) dst(%arg12 : memref<768x256xf32, #tpu.memory_space<vmem>>)
    %c0_49 = arith.constant 0 : index
    %c0_50 = arith.constant 0 : index
    %92 = vector.load %arg12[%c0_49, %c0_50] : memref<768x256xf32, #tpu.memory_space<vmem>>, vector<768x256xf32>
    %cst_51 = arith.constant dense<0.000000e+00> : vector<18x256xf32>
    %93 = tpu.matmul %91, %92, %cst_51 {dimension_numbers = #tpu.dot_dimension_numbers<[1], [0], [0], [1], [0, 0, 1, 1], [], []>} : vector<18x768xf32>, vector<768x256xf32>, vector<18x256xf32> -> vector<18x256xf32>
    %cst_52 = arith.constant 0.000000e+00 : f32
    %94 = vector.broadcast %cst_52 : f32 to vector<1x256xf32>
    %cst_53 = arith.constant dense<0.000000e+00> : vector<256xf32>
    %95 = vector.multi_reduction <add>, %93, %cst_53 [0] : vector<18x256xf32> to vector<256xf32>
    %96 = vector.shape_cast %95 : vector<256xf32> to vector<1x256xf32>
    %97 = arith.addf %94, %96 : vector<1x256xf32>
    %cst_54 = arith.constant 0.055555556 : f32
    %98 = vector.broadcast %cst_54 : f32 to vector<1x256xf32>
    %99 = arith.mulf %97, %98 : vector<1x256xf32>
    %cst_55 = arith.constant 0.000000e+00 : f32
    %100 = vector.broadcast %cst_55 : f32 to vector<1x256xf32>
    %101 = vector.broadcast %99 : vector<1x256xf32> to vector<18x256xf32>
    %102 = arith.subf %93, %101 : vector<18x256xf32>
    %103 = arith.mulf %102, %102 : vector<18x256xf32>
    %cst_56 = arith.constant dense<0.000000e+00> : vector<256xf32>
    %104 = vector.multi_reduction <add>, %103, %cst_56 [0] : vector<18x256xf32> to vector<256xf32>
    %105 = vector.shape_cast %104 : vector<256xf32> to vector<1x256xf32>
    %106 = arith.addf %100, %105 : vector<1x256xf32>
    %cst_57 = arith.constant 0.055555556 : f32
    %107 = vector.broadcast %cst_57 : f32 to vector<1x256xf32>
    %108 = arith.mulf %106, %107 : vector<1x256xf32>
    %cst_58 = arith.constant 9.99999974E-6 : f32
    %109 = vector.broadcast %cst_58 : f32 to vector<1x256xf32>
    %110 = arith.addf %108, %109 : vector<1x256xf32>
    %111 = math.rsqrt %110 : vector<1x256xf32>
    %112 = vector.extract_strided_slice %93 {offsets = [0, 0], sizes = [16, 256], strides = [1, 1]} : vector<18x256xf32> to vector<16x256xf32>
    %113 = vector.broadcast %99 : vector<1x256xf32> to vector<16x256xf32>
    %114 = arith.subf %112, %113 : vector<16x256xf32>
    %c0_59 = arith.constant 0 : index
    %c0_60 = arith.constant 0 : index
    %115 = vector.load %arg6[%c0_59, %c0_60] : memref<1x256xf32, #tpu.memory_space<vmem>>, vector<1x256xf32>
    %116 = arith.mulf %111, %115 : vector<1x256xf32>
    %117 = vector.broadcast %116 : vector<1x256xf32> to vector<16x256xf32>
    %118 = arith.mulf %114, %117 : vector<16x256xf32>
    %c0_61 = arith.constant 0 : index
    %c0_62 = arith.constant 0 : index
    %119 = vector.load %arg7[%c0_61, %c0_62] : memref<1x256xf32, #tpu.memory_space<vmem>>, vector<1x256xf32>
    %120 = vector.broadcast %119 : vector<1x256xf32> to vector<16x256xf32>
    %121 = arith.addf %118, %120 : vector<16x256xf32>
    %122 = vector.shape_cast %121 : vector<16x256xf32> to vector<2x8x256xf32>
    %123 = vector.extract_strided_slice %122 {offsets = [0, 0, 0], sizes = [2, 2, 256], strides = [1, 1, 1]} : vector<2x8x256xf32> to vector<2x2x256xf32>
    %124 = vector.extract_strided_slice %122 {offsets = [0, 2, 0], sizes = [2, 2, 256], strides = [1, 1, 1]} : vector<2x8x256xf32> to vector<2x2x256xf32>
    %125 = arith.maximumf %123, %124 : vector<2x2x256xf32>
    %126 = vector.extract_strided_slice %122 {offsets = [0, 4, 0], sizes = [2, 2, 256], strides = [1, 1, 1]} : vector<2x8x256xf32> to vector<2x2x256xf32>
    %127 = arith.maximumf %125, %126 : vector<2x2x256xf32>
    %128 = vector.extract_strided_slice %122 {offsets = [0, 6, 0], sizes = [2, 2, 256], strides = [1, 1, 1]} : vector<2x8x256xf32> to vector<2x2x256xf32>
    %129 = arith.maximumf %127, %128 : vector<2x2x256xf32>
    %130 = vector.shape_cast %129 : vector<2x2x256xf32> to vector<4x256xf32>
    %131 = vector.extract_strided_slice %130 {offsets = [0, 0], sizes = [2, 256], strides = [1, 1]} : vector<4x256xf32> to vector<2x256xf32>
    %132 = vector.extract_strided_slice %130 {offsets = [2, 0], sizes = [2, 256], strides = [1, 1]} : vector<4x256xf32> to vector<2x256xf32>
    %133 = arith.addf %131, %132 : vector<2x256xf32>
    %cst_63 = arith.constant 5.000000e-01 : f32
    %134 = vector.broadcast %cst_63 : f32 to vector<2x256xf32>
    %135 = arith.mulf %133, %134 : vector<2x256xf32>
    %c0_64 = arith.constant 0 : index
    %c0_65 = arith.constant 0 : index
    %136 = vector.load %arg8[%c0_64, %c0_65] : memref<256x128xf32, #tpu.memory_space<vmem>>, vector<256x128xf32>
    %cst_66 = arith.constant dense<0.000000e+00> : vector<2x128xf32>
    %137 = tpu.matmul %135, %136, %cst_66 {dimension_numbers = #tpu.dot_dimension_numbers<[1], [0], [0], [1], [0, 0, 1, 1], [], []>} : vector<2x256xf32>, vector<256x128xf32>, vector<2x128xf32> -> vector<2x128xf32>
    %c0_67 = arith.constant 0 : index
    %c0_68 = arith.constant 0 : index
    %138 = vector.load %arg9[%c0_67, %c0_68] : memref<1x128xf32, #tpu.memory_space<vmem>>, vector<1x128xf32>
    %139 = vector.broadcast %138 : vector<1x128xf32> to vector<2x128xf32>
    %140 = arith.addf %137, %139 : vector<2x128xf32>
    %c0_69 = arith.constant 0 : index
    %c0_70 = arith.constant 0 : index
    %141 = vector.load %arg10[%c0_69, %c0_70] : memref<2x128xf32, #tpu.memory_space<vmem>>, vector<2x128xf32>
    tpu.vector_store %arg10[%c0_69, %c0_70], %140 {strides = array<i32>} : memref<2x128xf32, #tpu.memory_space<vmem>>, vector<2x128xf32>,
    return
  }
  func.func @transform_0(%arg0: i32) -> (i32, i32) {
    %c0_i32 = arith.constant 0 : i32
    %c0_i32_0 = arith.constant 0 : i32
    %c0_i32_1 = arith.constant 0 : i32
    return %c0_i32, %c0_i32_0 : i32, i32
  }
  func.func @transform_1(%arg0: i32) -> (i32, i32) {
    %c0_i32 = arith.constant 0 : i32
    %c0_i32_0 = arith.constant 0 : i32
    %c0_i32_1 = arith.constant 0 : i32
    return %c0_i32, %c0_i32_0 : i32, i32
  }
  func.func @transform_2(%arg0: i32) -> (i32, i32) {
    %c0_i32 = arith.constant 0 : i32
    %c0_i32_0 = arith.constant 0 : i32
    %c0_i32_1 = arith.constant 0 : i32
    return %c0_i32, %c0_i32_0 : i32, i32
  }
  func.func @transform_3(%arg0: i32) -> (i32, i32) {
    %c0_i32 = arith.constant 0 : i32
    %c0_i32_0 = arith.constant 0 : i32
    %c0_i32_1 = arith.constant 0 : i32
    return %c0_i32, %c0_i32_0 : i32, i32
  }
  func.func @transform_5(%arg0: i32) -> (i32, i32) {
    %c0_i32 = arith.constant 0 : i32
    %c0_i32_0 = arith.constant 0 : i32
    %c0_i32_1 = arith.constant 0 : i32
    return %c0_i32, %c0_i32_0 : i32, i32
  }
  func.func @transform_6(%arg0: i32) -> (i32, i32) {
    %c0_i32 = arith.constant 0 : i32
    %c0_i32_0 = arith.constant 0 : i32
    %c0_i32_1 = arith.constant 0 : i32
    return %c0_i32, %c0_i32_0 : i32, i32
  }
  func.func @transform_7(%arg0: i32) -> (i32, i32) {
    %c0_i32 = arith.constant 0 : i32
    %c0_i32_0 = arith.constant 0 : i32
    %c0_i32_1 = arith.constant 0 : i32
    return %c0_i32, %c0_i32_0 : i32, i32
  }
  func.func @transform_8(%arg0: i32) -> (i32, i32) {
    %c0_i32 = arith.constant 0 : i32
    %c0_i32_0 = arith.constant 0 : i32
    %c0_i32_1 = arith.constant 0 : i32
    return %c0_i32, %c0_i32_0 : i32, i32
  }
  func.func @transform_9(%arg0: i32) -> (i32, i32) {
    %c0_i32 = arith.constant 0 : i32
    %c0_i32_0 = arith.constant 0 : i32
    %c0_i32_1 = arith.constant 0 : i32
    return %c0_i32, %c0_i32_0 : i32, i32
  }
}

</mosaic_0001>

<llo_original>
// kernel: m3_forward.1
$region0: #{m3_forward.1}
  #allocation0 [shape = 'u32[]', space=smem, size = 0x4, offset = 0x4, fixed_abs, tag = 'smem constant byte address 0x4 - core index']
  #allocation1 [shape = 'u32[144,128]{1,0:T(1,128)}', space=vmem, size = 0x12000, scoped, tag = 'internal scratch']
  #allocation2 [shape = 'f32[96,128]{1,0:T(8,128)}', space=vmem, size = 0xc000, scoped, tag = 'scratch operand']
  #allocation3 [shape = 'f32[768,256]{1,0:T(8,128)}', space=vmem, size = 0xc0000, scoped, tag = 'scratch operand']
  #allocation4 [shape = 's32[1]{0}', space=sflag, size = 0x4, scoped, tag = 'scratch operand']
  #allocation11 [shape = 's32[]', space=sflag, size = 0x4, offset = 0, fixed_abs, tag = 'sflag constant byte address 0x0 - dummy sync flag']
  #allocation12 [shape = 's32[]', space=sflag, size = 0x4, offset = 0, fixed_abs, tag = 'sflag constant byte address 0x0 - dummy sync flag']
  #allocation13 [shape = 'u32[]', space=smem, size = 0x4, offset = 0x44, fixed_abs, tag = 'smem constant byte address 0x44 - assertion arg 0']
  #allocation14 [shape = 'u32[]', space=smem, size = 0x4, offset = 0x48, fixed_abs, tag = 'smem constant byte address 0x48 - assertion arg 1']
  %s0 = inlined_call_operand.vmem [shape: f32[8,304], index: 0, kind: input, shape index: {}]
  %s1 = inlined_call_operand.hbm [shape: f32[128,256], index: 1, kind: input, shape index: {}]
  %s2 = inlined_call_operand.vmem [shape: f32[1,256], index: 2, kind: input, shape index: {}]
  %s3 = inlined_call_operand.vmem [shape: f32[1,256], index: 3, kind: input, shape index: {}]
  %s4 = inlined_call_operand.hbm [shape: f32[768,256], index: 4, kind: input, shape index: {}]
  %s5 = inlined_call_operand.vmem [shape: f32[1,256], index: 5, kind: input, shape index: {}]
  %s6 = inlined_call_operand.vmem [shape: f32[1,256], index: 6, kind: input, shape index: {}]
  %s7 = inlined_call_operand.hbm [shape: f32[256,128], index: 7, kind: input, shape index: {}]
  %s8 = inlined_call_operand.vmem [shape: f32[1,128], index: 8, kind: input, shape index: {}]
  %s9 = inlined_call_operand.hbm [shape: f32[2,128], index: 9, kind: output, shape index: {}]
  %s10 = sld [smem:[#allocation0]]
  $region54: #{m3_forward.1} parent=0
    _
  %s12 = ssub.s32 1, %s10
  %s13 = scalar_select 0, %s12, %s10
  $region1: #{m3_forward.1} parent=0
    #allocation5 [shape = 'u8[131072]{0}', space=vmem, size = 0x20000, scoped, tag = 'input window, operand 1, single buffered']
    #allocation6 [shape = 's32[1]{0}', space=sflag, size = 0x4, scoped, tag = 'scoped memory for m3_forward.1']
    #allocation7 [shape = 's32[1]{0}', space=sflag, size = 0x4, scoped, tag = 'scoped memory for m3_forward.1']
    #allocation8 [shape = 'u8[131072]{0}', space=vmem, size = 0x20000, scoped, tag = 'input window, operand 7, single buffered']
    #allocation9 [shape = 's32[1]{0}', space=sflag, size = 0x4, scoped, tag = 'scoped memory for m3_forward.1']
    #allocation10 [shape = 'u8[1024]{0}', space=vmem, size = 0x400, scoped, tag = 'output window, operand 0, single buffered']
    %14 = vsyncpa [#allocation6], 0
    %15 = vsyncpa [#allocation9], 0
    %16 = vsyncpa [#allocation7], 0
    // Predicated region
    $region2: #{m3_forward.1} parent=1 // pred_check
      _
    $region3: #{m3_forward.1} parent=1 // pred_check_branch
      %18 = sbr.rel (0) target = $region5
    $region4: #{m3_forward.1} parent=1 // pred_region
      _
    $region5: #{m3_forward.1} parent=1 // pred_fallthru
      _
    // Predicated region
    $region6: #{m3_forward.1} parent=1 // pred_check
      _
    $region7: #{m3_forward.1} parent=1 // pred_check_branch
      %20 = sbr.rel (0) target = $region9
    $region8: #{m3_forward.1} parent=1 // pred_region
      %s22 = ssub.s32 4096, 4096
      %23 = vsyncadd [#allocation6], %s22
      %s24 = sshll.u32 [#allocation5], 4
      %s25 = int_to_ptr.vmem [resolvable:$true] %s24
      %30 = dma.hbm_to_vmem [thread:$0]  %s1, 4096, %s25, [#allocation6], 256, 256, 16
    $region9: #{m3_forward.1} parent=1 // pred_fallthru
      _
    // Predicated region
    $region10: #{m3_forward.1} parent=1 // pred_check
      _
    $region11: #{m3_forward.1} parent=1 // pred_check_branch
      %32 = sbr.rel (0) target = $region13
    $region12: #{m3_forward.1} parent=1 // pred_region
      _
    $region13: #{m3_forward.1} parent=1 // pred_fallthru
      _
    // Predicated region
    $region14: #{m3_forward.1} parent=1 // pred_check
      _
    $region15: #{m3_forward.1} parent=1 // pred_check_branch
      %34 = sbr.rel (0) target = $region17
    $region16: #{m3_forward.1} parent=1 // pred_region
      _
    $region17: #{m3_forward.1} parent=1 // pred_fallthru
      _
    // Predicated region
    $region18: #{m3_forward.1} parent=1 // pred_check
      _
    $region19: #{m3_forward.1} parent=1 // pred_check_branch
      %36 = sbr.rel (0) target = $region21
    $region20: #{m3_forward.1} parent=1 // pred_region
      _
    $region21: #{m3_forward.1} parent=1 // pred_fallthru
      _
    // Predicated region
    $region22: #{m3_forward.1} parent=1 // pred_check
      _
    $region23: #{m3_forward.1} parent=1 // pred_check_branch
      %38 = sbr.rel (0) target = $region25
    $region24: #{m3_forward.1} parent=1 // pred_region
      _
    $region25: #{m3_forward.1} parent=1 // pred_fallthru
      _
    // Predicated region
    $region26: #{m3_forward.1} parent=1 // pred_check
      _
    $region27: #{m3_forward.1} parent=1 // pred_check_branch
      %40 = sbr.rel (0) target = $region29
    $region28: #{m3_forward.1} parent=1 // pred_region
      %s42 = ssub.s32 4096, 4096
      %43 = vsyncadd [#allocation9], %s42
      %s44 = sshll.u32 [#allocation8], 4
      %s45 = int_to_ptr.vmem [resolvable:$true] %s44
      %50 = dma.hbm_to_vmem [thread:$0]  %s7, 4096, %s45, [#allocation9], 128, 128, 8
    $region29: #{m3_forward.1} parent=1 // pred_fallthru
      _
    // Predicated region
    $region30: #{m3_forward.1} parent=1 // pred_check
      _
    $region31: #{m3_forward.1} parent=1 // pred_check_branch
      %52 = sbr.rel (0) target = $region33
    $region32: #{m3_forward.1} parent=1 // pred_region
      _
    $region33: #{m3_forward.1} parent=1 // pred_fallthru
      _
    // Predicated region
    $region34: #{m3_forward.1} parent=1 // pred_check
      _
    $region35: #{m3_forward.1} parent=1 // pred_check_branch
      %54 = sbr.rel (0) target = $region37
    $region36: #{m3_forward.1} parent=1 // pred_region
      %55 = dma.done [#allocation6], 4096
    $region37: #{m3_forward.1} parent=1 // pred_fallthru
      _
    // Predicated region
    $region38: #{m3_forward.1} parent=1 // pred_check
      _
    $region39: #{m3_forward.1} parent=1 // pred_check_branch
      %57 = sbr.rel (0) target = $region41
    $region40: #{m3_forward.1} parent=1 // pred_region
      %58 = dma.done [#allocation9], 4096
    $region41: #{m3_forward.1} parent=1 // pred_fallthru
      _
    // Predicated region
    $region42: #{m3_forward.1} parent=1 // pred_check
      _
    $region43: #{m3_forward.1} parent=1 // pred_check_branch
      %60 = sbr.rel target = $region45
    $region44: #{m3_forward.1} parent=1 // pred_region
      %61 = sst [smem:[#allocation13]] [#allocation12]
      %62 = sst [smem:[#allocation14]] [#allocation11]
    $region45: #{m3_forward.1} parent=1 // pred_fallthru
      _
    %64 = shalt.err (0)
    %s66 = sshll.u32 [#allocation3], 4
    %s67 = int_to_ptr.vmem [resolvable:$true] %s66
    %69 = dma.hbm_to_vmem [thread:$0]  %s4, 24576, %s67, [#allocation4]
    %v70 = vld [vmem:[%s0] sm:$0xff]
    %71 = vst [vmem:[#allocation2] sm:$0xff] %v70
    %v72 = vld [vmem:[%s0] sm:$0xff]
    %v73 = vld [vmem:[%s0 + $0x8] sm:$0xff]
    %76 = vrot.lane.b32.xlu0 %v72, 112
    %v77 = vpop.permute.xlu0 %76
    %78 = vrot.lane.b32.xlu0 %v73, 112
    %v79 = vpop.permute.xlu0 %78
    %vm80 = vcmask 916480
    %v81 = vsel %vm80, %v77, %v79
    %83 = vst [vmem:[#allocation2 + $0x8] sm:$0xff] %v81
    %v84 = vld [vmem:[%s0] sm:$0xff]
    %v85 = vld [vmem:[%s0 + $0x8] sm:$0xff]
    %88 = vrot.lane.b32.xlu0 %v84, 96
    %v89 = vpop.permute.xlu0 %88
    %90 = vrot.lane.b32.xlu0 %v85, 96
    %v91 = vpop.permute.xlu0 %90
    %vm92 = vcmask 785408
    %v93 = vsel %vm92, %v89, %v91
    %95 = vst [vmem:[#allocation2 + $0x10] sm:$0xff] %v93
    %v96 = vld [vmem:[%s0] sm:$0xff]
    %v97 = vld [vmem:[%s0 + $0x8] sm:$0xff]
    %100 = vrot.lane.b32.xlu0 %v96, 80
    %v101 = vpop.permute.xlu0 %100
    %102 = vrot.lane.b32.xlu0 %v97, 80
    %v103 = vpop.permute.xlu0 %102
    %vm104 = vcmask 654336
    %v105 = vsel %vm104, %v101, %v103
    %107 = vst [vmem:[#allocation2 + $0x18] sm:$0xff] %v105
    %v108 = vld [vmem:[%s0] sm:$0xff]
    %v109 = vld [vmem:[%s0 + $0x8] sm:$0xff]
    %112 = vrot.lane.b32.xlu0 %v108, 64
    %v113 = vpop.permute.xlu0 %112
    %114 = vrot.lane.b32.xlu0 %v109, 64
    %v115 = vpop.permute.xlu0 %114
    %vm116 = vcmask 523264
    %v117 = vsel %vm116, %v113, %v115
    %119 = vst [vmem:[#allocation2 + $0x20] sm:$0xff] %v117
    %v120 = vld [vmem:[%s0] sm:$0xff]
    %v121 = vld [vmem:[%s0 + $0x8] sm:$0xff]
    %124 = vrot.lane.b32.xlu0 %v120, 48
    %v125 = vpop.permute.xlu0 %124
    %126 = vrot.lane.b32.xlu0 %v121, 48
    %v127 = vpop.permute.xlu0 %126
    %vm128 = vcmask 392192
    %v129 = vsel %vm128, %v125, %v127
    %131 = vst [vmem:[#allocation2 + $0x28] sm:$0xff] %v129
    %v132 = vld [vmem:[%s0] sm:$0xff]
    %v133 = vld [vmem:[%s0 + $0x8] sm:$0xff]
    %136 = vrot.lane.b32.xlu0 %v132, 32
    %v137 = vpop.permute.xlu0 %136
    %138 = vrot.lane.b32.xlu0 %v133, 32
    %v139 = vpop.permute.xlu0 %138
    %vm140 = vcmask 261120
    %v141 = vsel %vm140, %v137, %v139
    %143 = vst [vmem:[#allocation2 + $0x30] sm:$0xff] %v141
    %v144 = vld [vmem:[%s0] sm:$0xff]
    %v145 = vld [vmem:[%s0 + $0x8] sm:$0xff]
    %148 = vrot.lane.b32.xlu0 %v144, 16
    %v149 = vpop.permute.xlu0 %148
    %150 = vrot.lane.b32.xlu0 %v145, 16
    %v151 = vpop.permute.xlu0 %150
    %vm152 = vcmask 130048
    %v153 = vsel %vm152, %v149, %v151
    %155 = vst [vmem:[#allocation2 + $0x38] sm:$0xff] %v153
    %v156 = vld [vmem:[%s0 + $0x8] sm:$0xff]
    %157 = vst [vmem:[#allocation2 + $0x40] sm:$0xff] %v156
    %v158 = vld [vmem:[%s0 + $0x8] sm:$0xff]
    %v159 = vld [vmem:[%s0 + $0x10] sm:$0xff]
    %162 = vrot.lane.b32.xlu0 %v158, 112
    %v163 = vpop.permute.xlu0 %162
    %164 = vrot.lane.b32.xlu0 %v159, 112
    %v165 = vpop.permute.xlu0 %164
    %v166 = vsel %vm80, %v163, %v165
    %168 = vst [vmem:[#allocation2 + $0x48] sm:$0xff] %v166
    %v169 = vld [vmem:[%s0 + $0x8] sm:$0xff]
    %v170 = vld [vmem:[%s0 + $0x10] sm:$0xff]
    %173 = vrot.lane.b32.xlu0 %v169, 96
    %v174 = vpop.permute.xlu0 %173
    %175 = vrot.lane.b32.xlu0 %v170, 96
    %v176 = vpop.permute.xlu0 %175
    %v177 = vsel %vm92, %v174, %v176
    %179 = vst [vmem:[#allocation2 + $0x50] sm:$0xff] %v177
    %v180 = vld [vmem:[%s0 + $0x8] sm:$0xff]
    %v181 = vld [vmem:[%s0 + $0x10] sm:$0xff]
    %184 = vrot.lane.b32.xlu0 %v180, 80
    %v185 = vpop.permute.xlu0 %184
    %186 = vrot.lane.b32.xlu0 %v181, 80
    %v187 = vpop.permute.xlu0 %186
    %v188 = vsel %vm104, %v185, %v187
    %190 = vst [vmem:[#allocation2 + $0x58] sm:$0xff] %v188
    %v191 = vld [vmem:[#allocation2] sm:$0xff]
    %v192 = vld [vmem:[#allocation2 + $0x8] sm:$0xff]
    %v193 = vld [vmem:[#allocation2 + $0x10] sm:$0xff]
    %v194 = vld [vmem:[#allocation2 + $0x18] sm:$0xff]
    %v195 = vld [vmem:[#allocation2 + $0x20] sm:$0xff]
    %v196 = vld [vmem:[#allocation2 + $0x28] sm:$0xff]
    %v197 = vld [vmem:[#allocation2 + $0x30] sm:$0xff]
    %v198 = vld [vmem:[#allocation2 + $0x38] sm:$0xff]
    %v199 = vld [vmem:[#allocation2 + $0x40] sm:$0xff]
    %v200 = vld [vmem:[#allocation2 + $0x48] sm:$0xff]
    %v201 = vld [vmem:[#allocation2 + $0x50] sm:$0xff]
    %v202 = vld [vmem:[#allocation2 + $0x58] sm:$0x3]
    %v203 = vld [vmem:[#allocation5] sm:$0xff]
    %v204 = vld [vmem:[#allocation5 + $0x8] sm:$0xff]
    %v205 = vld [vmem:[#allocation5 + $0x10] sm:$0xff]
    %v206 = vld [vmem:[#allocation5 + $0x18] sm:$0xff]
    %v207 = vld [vmem:[#allocation5 + $0x20] sm:$0xff]
    %v208 = vld [vmem:[#allocation5 + $0x28] sm:$0xff]
    %v209 = vld [vmem:[#allocation5 + $0x30] sm:$0xff]
    %v210 = vld [vmem:[#allocation5 + $0x38] sm:$0xff]
    %v211 = vld [vmem:[#allocation5 + $0x40] sm:$0xff]
    %v212 = vld [vmem:[#allocation5 + $0x48] sm:$0xff]
    %v213 = vld [vmem:[#allocation5 + $0x50] sm:$0xff]
    %v214 = vld [vmem:[#allocation5 + $0x58] sm:$0xff]
    %v215 = vld [vmem:[#allocation5 + $0x60] sm:$0xff]
    %v216 = vld [vmem:[#allocation5 + $0x68] sm:$0xff]
    %v217 = vld [vmem:[#allocation5 + $0x70] sm:$0xff]
    %v218 = vld [vmem:[#allocation5 + $0x78] sm:$0xff]
    %v219 = vld [vmem:[#allocation5 + $0x80] sm:$0xff]
    %v220 = vld [vmem:[#allocation5 + $0x88] sm:$0xff]
    %v221 = vld [vmem:[#allocation5 + $0x90] sm:$0xff]
    %v222 = vld [vmem:[#allocation5 + $0x98] sm:$0xff]
    %v223 = vld [vmem:[#allocation5 + $0xa0] sm:$0xff]
    %v224 = vld [vmem:[#allocation5 + $0xa8] sm:$0xff]
    %v225 = vld [vmem:[#allocation5 + $0xb0] sm:$0xff]
    %v226 = vld [vmem:[#allocation5 + $0xb8] sm:$0xff]
    %v227 = vld [vmem:[#allocation5 + $0xc0] sm:$0xff]
    %v228 = vld [vmem:[#allocation5 + $0xc8] sm:$0xff]
    %v229 = vld [vmem:[#allocation5 + $0xd0] sm:$0xff]
    %v230 = vld [vmem:[#allocation5 + $0xd8] sm:$0xff]
    %v231 = vld [vmem:[#allocation5 + $0xe0] sm:$0xff]
    %v232 = vld [vmem:[#allocation5 + $0xe8] sm:$0xff]
    %v233 = vld [vmem:[#allocation5 + $0xf0] sm:$0xff]
    %v234 = vld [vmem:[#allocation5 + $0xf8] sm:$0xff]
    %235 = vmatprep.subr.mxu0 %v204
    %236 = vmatpush1.msra.mxu0 %v203
    %237 = vmatprep.subr.mxu0 %v206
    %238 = vmatpush1.msra.mxu0 %v205
    %239 = vmatprep.subr.mxu0 %v208
    %240 = vmatpush1.msra.mxu0 %v207
    %241 = vmatprep.subr.mxu0 %v210
    %242 = vmatpush1.msra.mxu0 %v209
    %243 = vmatprep.subr.mxu0 %v212
    %244 = vmatpush1.msra.mxu0 %v211
    %245 = vmatprep.subr.mxu0 %v214
    %246 = vmatpush1.msra.mxu0 %v213
    %247 = vmatprep.subr.mxu0 %v216
    %248 = vmatpush1.msra.mxu0 %v215
    %249 = vmatprep.subr.mxu0 %v218
    %250 = vmatpush1.msra.mxu0 %v217
    %251 = vmatprep.subr.mxu0 %v220
    %252 = vmatpush1.msra.mxu0 %v219
    %253 = vmatprep.subr.mxu0 %v222
    %254 = vmatpush1.msra.mxu0 %v221
    %255 = vmatprep.subr.mxu0 %v224
    %256 = vmatpush1.msra.mxu0 %v223
    %257 = vmatprep.subr.mxu0 %v226
    %258 = vmatpush1.msra.mxu0 %v225
    %259 = vmatprep.subr.mxu0 %v228
    %260 = vmatpush1.msra.mxu0 %v227
    %261 = vmatprep.subr.mxu0 %v230
    %262 = vmatpush1.msra.mxu0 %v229
    %263 = vmatprep.subr.mxu0 %v232
    %264 = vmatpush1.msra.mxu0 %v231
    %265 = vmatprep.subr.mxu0 %v234
    %266 = vmatpush1.msra.mxu0 %v233
    %267 = vmatprep.subr.mxu0 0.0
    %268 = vmatpush1.msra.mxu0 0.0
    %269 = vmatprep.subr.mxu0 0.0
    %270 = vmatpush1.msra.mxu0 0.0
    %271 = vmatprep.subr.mxu0 0.0
    %272 = vmatpush1.msra.mxu0 0.0
    %273 = vmatprep.subr.mxu0 0.0
    %274 = vmatpush1.msra.mxu0 0.0
    %275 = vmatprep.subr.mxu0 0.0
    %276 = vmatpush1.msra.mxu0 0.0
    %277 = vmatprep.subr.mxu0 0.0
    %278 = vmatpush1.msra.mxu0 0.0
    %279 = vmatprep.subr.mxu0 0.0
    %280 = vmatpush1.msra.mxu0 0.0
    %281 = vmatprep.subr.mxu0 0.0
    %282 = vmatpush1.msra.mxu0 0.0
    %283 = vmatprep.subr.mxu0 0.0
    %284 = vmatpush1.msra.mxu0 0.0
    %285 = vmatprep.subr.mxu0 0.0
    %286 = vmatpush1.msra.mxu0 0.0
    %287 = vmatprep.subr.mxu0 0.0
    %288 = vmatpush1.msra.mxu0 0.0
    %289 = vmatprep.subr.mxu0 0.0
    %290 = vmatpush1.msra.mxu0 0.0
    %291 = vmatprep.subr.mxu0 0.0
    %292 = vmatpush1.msra.mxu0 0.0
    %293 = vmatprep.subr.mxu0 0.0
    %294 = vmatpush1.msra.mxu0 0.0
    %295 = vmatprep.subr.mxu0 0.0
    %296 = vmatpush1.msra.mxu0 0.0
    %297 = vmatprep.subr.mxu0 0.0
    %298 = vmatpush1.msra.mxu0 0.0
    %299 = vmatprep.mubr.f32.mxu0 0.0
    %300 = vmatmul.mubr.f32.gmra.mrb[0].mxu0 %v191
    %v301 = vpop.f32.mrb[0].mxu0
    %v302 = vadd.f32 0.0, %v301
    %v303 = vpop.f32.mrb[0].mxu0
    %v304 = vadd.f32 0.0, %v303
    %305 = vmatprep.mubr.f32.mxu0 0.0
    %306 = vmatmul.mubr.f32.gmra.mrb[0].mxu0 %v192
    %v307 = vpop.f32.mrb[0].mxu0
    %v308 = vadd.f32 0.0, %v307
    %v309 = vpop.f32.mrb[0].mxu0
    %v310 = vadd.f32 0.0, %v309
    %311 = vmatprep.mubr.f32.mxu0 0.0
    %312 = vmatmul.mubr.f32.gmra.mrb[0].mxu0 %v193
    %v313 = vpop.f32.mrb[0].mxu0
    %v314 = vadd.f32 0.0, %v313
    %v315 = vpop.f32.mrb[0].mxu0
    %v316 = vadd.f32 0.0, %v315
    %317 = vmatprep.mubr.f32.mxu0 0.0
    %318 = vmatmul.mubr.f32.gmra.mrb[0].mxu0 %v194
    %v319 = vpop.f32.mrb[0].mxu0
    %v320 = vadd.f32 0.0, %v319
    %v321 = vpop.f32.mrb[0].mxu0
    %v322 = vadd.f32 0.0, %v321
    %323 = vmatprep.mubr.f32.mxu0 0.0
    %324 = vmatmul.mubr.f32.gmra.mrb[0].mxu0 %v195
    %v325 = vpop.f32.mrb[0].mxu0
    %v326 = vadd.f32 0.0, %v325
    %v327 = vpop.f32.mrb[0].mxu0
    %v328 = vadd.f32 0.0, %v327
    %329 = vmatprep.mubr.f32.mxu0 0.0
    %330 = vmatmul.mubr.f32.gmra.mrb[0].mxu0 %v196
    %v331 = vpop.f32.mrb[0].mxu0
    %v332 = vadd.f32 0.0, %v331
    %v333 = vpop.f32.mrb[0].mxu0
    %v334 = vadd.f32 0.0, %v333
    %335 = vmatprep.mubr.f32.mxu0 0.0
    %336 = vmatmul.mubr.f32.gmra.mrb[0].mxu0 %v197
    %v337 = vpop.f32.mrb[0].mxu0
    %v338 = vadd.f32 0.0, %v337
    %v339 = vpop.f32.mrb[0].mxu0
    %v340 = vadd.f32 0.0, %v339
    %341 = vmatprep.mubr.f32.mxu0 0.0
    %342 = vmatmul.mubr.f32.gmra.mrb[0].mxu0 %v198
    %v343 = vpop.f32.mrb[0].mxu0
    %v344 = vadd.f32 0.0, %v343
    %v345 = vpop.f32.mrb[0].mxu0
    %v346 = vadd.f32 0.0, %v345
    %347 = vmatprep.mubr.f32.mxu0 0.0
    %348 = vmatmul.mubr.f32.gmra.mrb[0].mxu0 %v199
    %v349 = vpop.f32.mrb[0].mxu0
    %v350 = vadd.f32 0.0, %v349
    %v351 = vpop.f32.mrb[0].mxu0
    %v352 = vadd.f32 0.0, %v351
    %353 = vmatprep.mubr.f32.mxu0 0.0
    %354 = vmatmul.mubr.f32.gmra.mrb[0].mxu0 %v200
    %v355 = vpop.f32.mrb[0].mxu0
    %v356 = vadd.f32 0.0, %v355
    %v357 = vpop.f32.mrb[0].mxu0
    %v358 = vadd.f32 0.0, %v357
    %359 = vmatprep.mubr.f32.mxu0 0.0
    %360 = vmatmul.mubr.f32.gmra.mrb[0].mxu0 %v201
    %v361 = vpop.f32.mrb[0].mxu0
    %v362 = vadd.f32 0.0, %v361
    %v363 = vpop.f32.mrb[0].mxu0
    %v364 = vadd.f32 0.0, %v363
    %365 = vmatprep.mubr.f32.mxu0 0.0
    %366 = vmatmul.mubr.f32.gmra.mrb[0].mxu0 %v202
    %v367 = vpop.f32.mrb[0].mxu0
    %v368 = vadd.f32 0.0, %v367
    %v369 = vpop.f32.mrb[0].mxu0
    %v370 = vadd.f32 0.0, %v369
    %371 = vdwg.mxu0
    %v372 = vadd.f32 %v302, %v308
    %v373 = vadd.f32 %v372, %v314
    %v374 = vadd.f32 %v373, %v320
    %v375 = vrot.slane %v374, 4
    %v376 = vadd.f32 %v374, %v375
    %v377 = vrot.slane %v376, 2
    %v378 = vadd.f32 %v376, %v377
    %v379 = vrot.slane %v378, 1
    %v380 = vadd.f32 %v378, %v379
    %v381 = vadd.f32 %v304, %v310
    %v382 = vadd.f32 %v381, %v316
    %v383 = vadd.f32 %v382, %v322
    %v384 = vrot.slane %v383, 4
    %v385 = vadd.f32 %v383, %v384
    %v386 = vrot.slane %v385, 2
    %v387 = vadd.f32 %v385, %v386
    %v388 = vrot.slane %v387, 1
    %v389 = vadd.f32 %v387, %v388
    %v390 = vadd.f32 %v380, 0.0
    %v391 = vadd.f32 %v389, 0.0
    %v392 = vadd.f32 %v326, %v332
    %v393 = vadd.f32 %v392, %v338
    %v394 = vadd.f32 %v393, %v344
    %v395 = vrot.slane %v394, 4
    %v396 = vadd.f32 %v394, %v395
    %v397 = vrot.slane %v396, 2
    %v398 = vadd.f32 %v396, %v397
    %v399 = vrot.slane %v398, 1
    %v400 = vadd.f32 %v398, %v399
    %v401 = vadd.f32 %v328, %v334
    %v402 = vadd.f32 %v401, %v340
    %v403 = vadd.f32 %v402, %v346
    %v404 = vrot.slane %v403, 4
    %v405 = vadd.f32 %v403, %v404
    %v406 = vrot.slane %v405, 2
    %v407 = vadd.f32 %v405, %v406
    %v408 = vrot.slane %v407, 1
    %v409 = vadd.f32 %v407, %v408
    %v410 = vadd.f32 %v390, %v400
    %v411 = vadd.f32 %v391, %v409
    %v412 = vadd.f32 %v350, %v356
    %v413 = vadd.f32 %v412, %v362
    %vm414 = vcmask 1041408
    %v415 = vsel %vm414, %v368, 0.0
    %v416 = vadd.f32 %v413, %v415
    %v417 = vrot.slane %v416, 4
    %v418 = vadd.f32 %v416, %v417
    %v419 = vrot.slane %v418, 2
    %v420 = vadd.f32 %v418, %v419
    %v421 = vrot.slane %v420, 1
    %v422 = vadd.f32 %v420, %v421
    %v423 = vadd.f32 %v352, %v358
    %v424 = vadd.f32 %v423, %v364
    %v425 = vsel %vm414, %v370, 0.0
    %v426 = vadd.f32 %v424, %v425
    %v427 = vrot.slane %v426, 4
    %v428 = vadd.f32 %v426, %v427
    %v429 = vrot.slane %v428, 2
    %v430 = vadd.f32 %v428, %v429
    %v431 = vrot.slane %v430, 1
    %v432 = vadd.f32 %v430, %v431
    %v433 = vadd.f32 %v410, %v422
    %v434 = vadd.f32 %v411, %v432
    %v435 = vmul.f32 %v433, 0.011111111
    %v436 = vmul.f32 %v434, 0.011111111
    %v437 = vsub.f32 %v302, %v435
    %v438 = vsub.f32 %v304, %v436
    %v439 = vsub.f32 %v308, %v435
    %v440 = vsub.f32 %v310, %v436
    %v441 = vsub.f32 %v314, %v435
    %v442 = vsub.f32 %v316, %v436
    %v443 = vsub.f32 %v320, %v435
    %v444 = vsub.f32 %v322, %v436
    %v445 = vmul.f32 %v437, %v437
    %v446 = vmul.f32 %v438, %v438
    %v447 = vmul.f32 %v439, %v439
    %v448 = vmul.f32 %v440, %v440
    %v449 = vmul.f32 %v441, %v441
    %v450 = vmul.f32 %v442, %v442
    %v451 = vmul.f32 %v443, %v443
    %v452 = vmul.f32 %v444, %v444
    %v453 = vadd.f32 %v445, %v447
    %v454 = vadd.f32 %v453, %v449
    %v455 = vadd.f32 %v454, %v451
    %v456 = vrot.slane %v455, 4
    %v457 = vadd.f32 %v455, %v456
    %v458 = vrot.slane %v457, 2
    %v459 = vadd.f32 %v457, %v458
    %v460 = vrot.slane %v459, 1
    %v461 = vadd.f32 %v459, %v460
    %v462 = vadd.f32 %v446, %v448
    %v463 = vadd.f32 %v462, %v450
    %v464 = vadd.f32 %v463, %v452
    %v465 = vrot.slane %v464, 4
    %v466 = vadd.f32 %v464, %v465
    %v467 = vrot.slane %v466, 2
    %v468 = vadd.f32 %v466, %v467
    %v469 = vrot.slane %v468, 1
    %v470 = vadd.f32 %v468, %v469
    %v471 = vadd.f32 %v461, 0.0
    %v472 = vadd.f32 %v470, 0.0
    %v473 = vsub.f32 %v326, %v435
    %v474 = vsub.f32 %v328, %v436
    %v475 = vsub.f32 %v332, %v435
    %v476 = vsub.f32 %v334, %v436
    %v477 = vsub.f32 %v338, %v435
    %v478 = vsub.f32 %v340, %v436
    %v479 = vsub.f32 %v344, %v435
    %v480 = vsub.f32 %v346, %v436
    %v481 = vmul.f32 %v473, %v473
    %v482 = vmul.f32 %v474, %v474
    %v483 = vmul.f32 %v475, %v475
    %v484 = vmul.f32 %v476, %v476
    %v485 = vmul.f32 %v477, %v477
    %v486 = vmul.f32 %v478, %v478
    %v487 = vmul.f32 %v479, %v479
    %v488 = vmul.f32 %v480, %v480
    %v489 = vadd.f32 %v481, %v483
    %v490 = vadd.f32 %v489, %v485
    %v491 = vadd.f32 %v490, %v487
    %v492 = vrot.slane %v491, 4
    %v493 = vadd.f32 %v491, %v492
    %v494 = vrot.slane %v493, 2
    %v495 = vadd.f32 %v493, %v494
    %v496 = vrot.slane %v495, 1
    %v497 = vadd.f32 %v495, %v496
    %v498 = vadd.f32 %v482, %v484
    %v499 = vadd.f32 %v498, %v486
    %v500 = vadd.f32 %v499, %v488
    %v501 = vrot.slane %v500, 4
    %v502 = vadd.f32 %v500, %v501
    %v503 = vrot.slane %v502, 2
    %v504 = vadd.f32 %v502, %v503
    %v505 = vrot.slane %v504, 1
    %v506 = vadd.f32 %v504, %v505
    %v507 = vadd.f32 %v471, %v497
    %v508 = vadd.f32 %v472, %v506
    %v509 = vsub.f32 %v350, %v435
    %v510 = vsub.f32 %v352, %v436
    %v511 = vsub.f32 %v356, %v435
    %v512 = vsub.f32 %v358, %v436
    %v513 = vsub.f32 %v362, %v435
    %v514 = vsub.f32 %v364, %v436
    %v515 = vsub.f32 %v368, %v435
    %v516 = vsub.f32 %v370, %v436
    %v517 = vmul.f32 %v509, %v509
    %v518 = vmul.f32 %v510, %v510
    %v519 = vmul.f32 %v511, %v511
    %v520 = vmul.f32 %v512, %v512
    %v521 = vmul.f32 %v513, %v513
    %v522 = vmul.f32 %v514, %v514
    %v523 = vmul.f32 %v515, %v515
    %v524 = vmul.f32 %v516, %v516
    %v525 = vadd.f32 %v517, %v519
    %v526 = vadd.f32 %v525, %v521
    %v527 = vsel %vm414, %v523, 0.0
    %v528 = vadd.f32 %v526, %v527
    %v529 = vrot.slane %v528, 4
    %v530 = vadd.f32 %v528, %v529
    %v531 = vrot.slane %v530, 2
    %v532 = vadd.f32 %v530, %v531
    %v533 = vrot.slane %v532, 1
    %v534 = vadd.f32 %v532, %v533
    %v535 = vadd.f32 %v518, %v520
    %v536 = vadd.f32 %v535, %v522
    %v537 = vsel %vm414, %v524, 0.0
    %v538 = vadd.f32 %v536, %v537
    %v539 = vrot.slane %v538, 4
    %v540 = vadd.f32 %v538, %v539
    %v541 = vrot.slane %v540, 2
    %v542 = vadd.f32 %v540, %v541
    %v543 = vrot.slane %v542, 1
    %v544 = vadd.f32 %v542, %v543
    %v545 = vadd.f32 %v507, %v534
    %v546 = vadd.f32 %v508, %v544
    %v547 = vmul.f32 %v545, 0.011111111
    %v548 = vmul.f32 %v546, 0.011111111
    %v549 = vadd.f32 %v547, 1e-05
    %v550 = vadd.f32 %v548, 1e-05
    %v551 = vrsqrt.pop %v549
    %v552 = vrsqrt.pop %v550
    %v553 = vld [vmem:[%s2] sm:$0x3]
    %v555 = vlaneseq
    %v556 = vshrl.u32 %v555, 7
    %v557 = vsub.s32 0, %v556
    %v558 = vrot.slane %v553, %v557
    %v559 = vlaneseq
    %v560 = vshrl.u32 %v559, 7
    %v561 = vsub.s32 1, %v560
    %v562 = vrot.slane %v553, %v561
    %v565 = vmul.f32 %v551, %v558
    %v566 = vmul.f32 %v552, %v562
    %v567 = vlaneseq
    %v568 = vshrl.u32 %v567, 7
    %v569 = vsub.s32 0, %v568
    %v570 = vrot.slane %v565, %v569
    %v571 = vlaneseq
    %v572 = vshrl.u32 %v571, 7
    %v573 = vsub.s32 0, %v572
    %v574 = vrot.slane %v566, %v573
    %v575 = vmul.f32 %v437, %v570
    %v576 = vmul.f32 %v438, %v574
    %v577 = vmul.f32 %v439, %v570
    %v578 = vmul.f32 %v440, %v574
    %v579 = vmul.f32 %v441, %v570
    %v580 = vmul.f32 %v442, %v574
    %v581 = vmul.f32 %v443, %v570
    %v582 = vmul.f32 %v444, %v574
    %v583 = vmul.f32 %v473, %v570
    %v584 = vmul.f32 %v474, %v574
    %v585 = vmul.f32 %v475, %v570
    %v586 = vmul.f32 %v476, %v574
    %v587 = vmul.f32 %v477, %v570
    %v588 = vmul.f32 %v478, %v574
    %v589 = vmul.f32 %v479, %v570
    %v590 = vmul.f32 %v480, %v574
    %v591 = vmul.f32 %v509, %v570
    %v592 = vmul.f32 %v510, %v574
    %v593 = vmul.f32 %v511, %v570
    %v594 = vmul.f32 %v512, %v574
    %v595 = vmul.f32 %v513, %v570
    %v596 = vmul.f32 %v514, %v574
    %v597 = vld [vmem:[%s3] sm:$0x3]
    %v599 = vlaneseq
    %v600 = vshrl.u32 %v599, 7
    %v601 = vsub.s32 0, %v600
    %v602 = vrot.slane %v597, %v601
    %v603 = vlaneseq
    %v604 = vshrl.u32 %v603, 7
    %v605 = vsub.s32 1, %v604
    %v606 = vrot.slane %v597, %v605
    %v609 = vadd.f32 %v575, %v602
    %v610 = vadd.f32 %v576, %v606
    %v611 = vadd.f32 %v577, %v602
    %v612 = vadd.f32 %v578, %v606
    %v613 = vadd.f32 %v579, %v602
    %v614 = vadd.f32 %v580, %v606
    %v615 = vadd.f32 %v581, %v602
    %v616 = vadd.f32 %v582, %v606
    %v617 = vadd.f32 %v583, %v602
    %v618 = vadd.f32 %v584, %v606
    %v619 = vadd.f32 %v585, %v602
    %v620 = vadd.f32 %v586, %v606
    %v621 = vadd.f32 %v587, %v602
    %v622 = vadd.f32 %v588, %v606
    %v623 = vadd.f32 %v589, %v602
    %v624 = vadd.f32 %v590, %v606
    %v625 = vadd.f32 %v591, %v602
    %v626 = vadd.f32 %v592, %v606
    %v627 = vadd.f32 %v593, %v602
    %v628 = vadd.f32 %v594, %v606
    %v629 = vadd.f32 %v595, %v602
    %v630 = vadd.f32 %v596, %v606
    %v653 = vrot.slane %v609, 2
    %v654 = vrot.slane %v610, 2
    %v655 = vrot.slane %v611, 2
    %v656 = vrot.slane %v612, 2
    %v657 = vrot.slane %v613, 2
    %v658 = vrot.slane %v614, 2
    %v659 = vrot.slane %v615, 2
    %v660 = vrot.slane %v616, 2
    %v661 = vrot.slane %v617, 2
    %v662 = vrot.slane %v618, 2
    %v663 = vrot.slane %v619, 2
    %v664 = vrot.slane %v620, 2
    %v665 = vrot.slane %v621, 2
    %v666 = vrot.slane %v622, 2
    %v667 = vrot.slane %v623, 2
    %v668 = vrot.slane %v624, 2
    %v669 = vrot.slane %v625, 2
    %v670 = vrot.slane %v626, 2
    %v671 = vrot.slane %v627, 2
    %v672 = vrot.slane %v628, 2
    %v673 = vrot.slane %v629, 2
    %v674 = vrot.slane %v630, 2
    %v697 = vmax.f32 %v609, %v653
    %v698 = vmax.f32 %v610, %v654
    %v699 = vmax.f32 %v611, %v655
    %v700 = vmax.f32 %v612, %v656
    %v701 = vmax.f32 %v613, %v657
    %v702 = vmax.f32 %v614, %v658
    %v703 = vmax.f32 %v615, %v659
    %v704 = vmax.f32 %v616, %v660
    %v705 = vmax.f32 %v617, %v661
    %v706 = vmax.f32 %v618, %v662
    %v707 = vmax.f32 %v619, %v663
    %v708 = vmax.f32 %v620, %v664
    %v709 = vmax.f32 %v621, %v665
    %v710 = vmax.f32 %v622, %v666
    %v711 = vmax.f32 %v623, %v667
    %v712 = vmax.f32 %v624, %v668
    %v713 = vmax.f32 %v625, %v669
    %v714 = vmax.f32 %v626, %v670
    %v715 = vmax.f32 %v627, %v671
    %v716 = vmax.f32 %v628, %v672
    %v717 = vmax.f32 %v629, %v673
    %v718 = vmax.f32 %v630, %v674
    %v719 = vrot.slane %v609, 4
    %v720 = vrot.slane %v610, 4
    %v721 = vrot.slane %v611, 4
    %v722 = vrot.slane %v612, 4
    %v723 = vrot.slane %v613, 4
    %v724 = vrot.slane %v614, 4
    %v725 = vrot.slane %v615, 4
    %v726 = vrot.slane %v616, 4
    %v727 = vrot.slane %v617, 4
    %v728 = vrot.slane %v618, 4
    %v729 = vrot.slane %v619, 4
    %v730 = vrot.slane %v620, 4
    %v731 = vrot.slane %v621, 4
    %v732 = vrot.slane %v622, 4
    %v733 = vrot.slane %v623, 4
    %v734 = vrot.slane %v624, 4
    %v735 = vrot.slane %v625, 4
    %v736 = vrot.slane %v626, 4
    %v737 = vrot.slane %v627, 4
    %v738 = vrot.slane %v628, 4
    %v739 = vrot.slane %v629, 4
    %v740 = vrot.slane %v630, 4
    %v763 = vmax.f32 %v697, %v719
    %v764 = vmax.f32 %v698, %v720
    %v765 = vmax.f32 %v699, %v721
    %v766 = vmax.f32 %v700, %v722
    %v767 = vmax.f32 %v701, %v723
    %v768 = vmax.f32 %v702, %v724
    %v769 = vmax.f32 %v703, %v725
    %v770 = vmax.f32 %v704, %v726
    %v771 = vmax.f32 %v705, %v727
    %v772 = vmax.f32 %v706, %v728
    %v773 = vmax.f32 %v707, %v729
    %v774 = vmax.f32 %v708, %v730
    %v775 = vmax.f32 %v709, %v731
    %v776 = vmax.f32 %v710, %v732
    %v777 = vmax.f32 %v711, %v733
    %v778 = vmax.f32 %v712, %v734
    %v779 = vmax.f32 %v713, %v735
    %v780 = vmax.f32 %v714, %v736
    %v781 = vmax.f32 %v715, %v737
    %v782 = vmax.f32 %v716, %v738
    %v783 = vmax.f32 %v717, %v739
    %v784 = vmax.f32 %v718, %v740
    %v785 = vrot.slane %v609, 6
    %v786 = vrot.slane %v610, 6
    %v787 = vrot.slane %v611, 6
    %v788 = vrot.slane %v612, 6
    %v789 = vrot.slane %v613, 6
    %v790 = vrot.slane %v614, 6
    %v791 = vrot.slane %v615, 6
    %v792 = vrot.slane %v616, 6
    %v793 = vrot.slane %v617, 6
    %v794 = vrot.slane %v618, 6
    %v795 = vrot.slane %v619, 6
    %v796 = vrot.slane %v620, 6
    %v797 = vrot.slane %v621, 6
    %v798 = vrot.slane %v622, 6
    %v799 = vrot.slane %v623, 6
    %v800 = vrot.slane %v624, 6
    %v801 = vrot.slane %v625, 6
    %v802 = vrot.slane %v626, 6
    %v803 = vrot.slane %v627, 6
    %v804 = vrot.slane %v628, 6
    %v805 = vrot.slane %v629, 6
    %v806 = vrot.slane %v630, 6
    %v829 = vmax.f32 %v763, %v785
    %v830 = vmax.f32 %v764, %v786
    %v831 = vmax.f32 %v765, %v787
    %v832 = vmax.f32 %v766, %v788
    %v833 = vmax.f32 %v767, %v789
    %v834 = vmax.f32 %v768, %v790
    %v835 = vmax.f32 %v769, %v791
    %v836 = vmax.f32 %v770, %v792
    %v837 = vmax.f32 %v771, %v793
    %v838 = vmax.f32 %v772, %v794
    %v839 = vmax.f32 %v773, %v795
    %v840 = vmax.f32 %v774, %v796
    %v841 = vmax.f32 %v775, %v797
    %v842 = vmax.f32 %v776, %v798
    %v843 = vmax.f32 %v777, %v799
    %v844 = vmax.f32 %v778, %v800
    %v845 = vmax.f32 %v779, %v801
    %v846 = vmax.f32 %v780, %v802
    %v847 = vmax.f32 %v781, %v803
    %v848 = vmax.f32 %v782, %v804
    %v849 = vmax.f32 %v783, %v805
    %v850 = vmax.f32 %v784, %v806
    %v873 = vcombine.low %v829, %v830
    %v875 = vunpack.c.l.s4 1983009808
    %v876 = vunpack.c.0.s8 %v875
    %v877 = vlaneseq
    %v878 = vshrl.u32 %v877, 7
    %v879 = vsub.s32 %v876, %v878
    %v880 = vrot.slane %v873, %v879
    %v881 = vcombine.low %v831, %v832
    %v883 = vunpack.c.l.s4 1983009808
    %v884 = vunpack.c.0.s8 %v883
    %v885 = vlaneseq
    %v886 = vshrl.u32 %v885, 7
    %v887 = vsub.s32 %v884, %v886
    %v888 = vrot.slane %v881, %v887
    %v889 = vcombine.low %v833, %v834
    %v891 = vunpack.c.l.s4 1983009808
    %v892 = vunpack.c.0.s8 %v891
    %v893 = vlaneseq
    %v894 = vshrl.u32 %v893, 7
    %v895 = vsub.s32 %v892, %v894
    %v896 = vrot.slane %v889, %v895
    %v897 = vcombine.low %v835, %v836
    %v899 = vunpack.c.l.s4 1983009808
    %v900 = vunpack.c.0.s8 %v899
    %v901 = vlaneseq
    %v902 = vshrl.u32 %v901, 7
    %v903 = vsub.s32 %v900, %v902
    %v904 = vrot.slane %v897, %v903
    %v905 = vcombine.low %v837, %v838
    %v907 = vunpack.c.l.s4 1983009808
    %v908 = vunpack.c.0.s8 %v907
    %v909 = vlaneseq
    %v910 = vshrl.u32 %v909, 7
    %v911 = vsub.s32 %v908, %v910
    %v912 = vrot.slane %v905, %v911
    %v913 = vcombine.low %v839, %v840
    %v915 = vunpack.c.l.s4 1983009808
    %v916 = vunpack.c.0.s8 %v915
    %v917 = vlaneseq
    %v918 = vshrl.u32 %v917, 7
    %v919 = vsub.s32 %v916, %v918
    %v920 = vrot.slane %v913, %v919
    %v921 = vcombine.low %v841, %v842
    %v923 = vunpack.c.l.s4 1983009808
    %v924 = vunpack.c.0.s8 %v923
    %v925 = vlaneseq
    %v926 = vshrl.u32 %v925, 7
    %v927 = vsub.s32 %v924, %v926
    %v928 = vrot.slane %v921, %v927
    %v929 = vcombine.low %v843, %v844
    %v931 = vunpack.c.l.s4 1983009808
    %v932 = vunpack.c.0.s8 %v931
    %v933 = vlaneseq
    %v934 = vshrl.u32 %v933, 7
    %v935 = vsub.s32 %v932, %v934
    %v936 = vrot.slane %v929, %v935
    %v937 = vcombine.low %v845, %v846
    %v939 = vunpack.c.l.s4 1983009808
    %v940 = vunpack.c.0.s8 %v939
    %v941 = vlaneseq
    %v942 = vshrl.u32 %v941, 7
    %v943 = vsub.s32 %v940, %v942
    %v944 = vrot.slane %v937, %v943
    %v945 = vcombine.low %v847, %v848
    %v947 = vunpack.c.l.s4 1983009808
    %v948 = vunpack.c.0.s8 %v947
    %v949 = vlaneseq
    %v950 = vshrl.u32 %v949, 7
    %v951 = vsub.s32 %v948, %v950
    %v952 = vrot.slane %v945, %v951
    %v953 = vcombine.low %v849, %v850
    %v955 = vunpack.c.l.s4 1983009808
    %v956 = vunpack.c.0.s8 %v955
    %v957 = vlaneseq
    %v958 = vshrl.u32 %v957, 7
    %v959 = vsub.s32 %v956, %v958
    %v960 = vrot.slane %v953, %v959
    %v961 = vcombine.low %v880, %v888
    %v962 = vcombine.low %v896, %v904
    %v964 = vunpack.c.l.s4 1983009808
    %v965 = vunpack.c.0.s8 %v964
    %v966 = vlaneseq
    %v967 = vshrl.u32 %v966, 7
    %v968 = vsub.s32 %v965, %v967
    %v969 = vrot.slane %v961, %v968
    %v971 = vunpack.c.l.s4 1983009808
    %v972 = vunpack.c.0.s8 %v971
    %v973 = vlaneseq
    %v974 = vshrl.u32 %v973, 7
    %v975 = vsub.s32 %v972, %v974
    %v976 = vrot.slane %v962, %v975
    %v977 = vcombine.low %v969, %v976
    %v978 = vcombine.high %v969, %v976
    %v979 = vcombine.low %v912, %v920
    %v980 = vcombine.low %v928, %v936
    %v982 = vunpack.c.l.s4 1983009808
    %v983 = vunpack.c.0.s8 %v982
    %v984 = vlaneseq
    %v985 = vshrl.u32 %v984, 7
    %v986 = vsub.s32 %v983, %v985
    %v987 = vrot.slane %v979, %v986
    %v989 = vunpack.c.l.s4 1983009808
    %v990 = vunpack.c.0.s8 %v989
    %v991 = vlaneseq
    %v992 = vshrl.u32 %v991, 7
    %v993 = vsub.s32 %v990, %v992
    %v994 = vrot.slane %v980, %v993
    %v995 = vcombine.low %v987, %v994
    %v996 = vcombine.high %v987, %v994
    %v998 = vunpack.c.l.s4 1983009808
    %v999 = vunpack.c.0.s8 %v998
    %v1000 = vlaneseq
    %v1001 = vshrl.u32 %v1000, 7
    %v1002 = vsub.s32 %v999, %v1001
    %v1003 = vrot.slane %v944, %v1002
    %v1004 = vcombine.high %v1003, %v1003
    %v1011 = vcombine.low %v888, %v896
    %v1012 = vcombine.low %v904, %v912
    %v1014 = vunpack.c.l.s4 1983009808
    %v1015 = vunpack.c.0.s8 %v1014
    %v1016 = vlaneseq
    %v1017 = vshrl.u32 %v1016, 7
    %v1018 = vsub.s32 %v1015, %v1017
    %v1019 = vrot.slane %v1011, %v1018
    %v1021 = vunpack.c.l.s4 1983009808
    %v1022 = vunpack.c.0.s8 %v1021
    %v1023 = vlaneseq
    %v1024 = vshrl.u32 %v1023, 7
    %v1025 = vsub.s32 %v1022, %v1024
    %v1026 = vrot.slane %v1012, %v1025
    %v1027 = vcombine.low %v1019, %v1026
    %v1028 = vcombine.high %v1019, %v1026
    %v1029 = vcombine.low %v920, %v928
    %v1030 = vcombine.low %v936, %v944
    %v1032 = vunpack.c.l.s4 1983009808
    %v1033 = vunpack.c.0.s8 %v1032
    %v1034 = vlaneseq
    %v1035 = vshrl.u32 %v1034, 7
    %v1036 = vsub.s32 %v1033, %v1035
    %v1037 = vrot.slane %v1029, %v1036
    %v1039 = vunpack.c.l.s4 1983009808
    %v1040 = vunpack.c.0.s8 %v1039
    %v1041 = vlaneseq
    %v1042 = vshrl.u32 %v1041, 7
    %v1043 = vsub.s32 %v1040, %v1042
    %v1044 = vrot.slane %v1030, %v1043
    %v1045 = vcombine.low %v1037, %v1044
    %v1046 = vcombine.high %v1037, %v1044
    %v1048 = vunpack.c.l.s4 1983009808
    %v1049 = vunpack.c.0.s8 %v1048
    %v1050 = vlaneseq
    %v1051 = vshrl.u32 %v1050, 7
    %v1052 = vsub.s32 %v1049, %v1051
    %v1053 = vrot.slane %v952, %v1052
    %v1054 = vcombine.high %v1053, %v1053
    %v1061 = vcombine.low %v976, %v987
    %v1062 = vcombine.high %v976, %v987
    %v1063 = vcombine.low %v944, %v952
    %v1065 = vunpack.c.l.s4 1983009808
    %v1066 = vunpack.c.0.s8 %v1065
    %v1067 = vlaneseq
    %v1068 = vshrl.u32 %v1067, 7
    %v1069 = vsub.s32 %v1066, %v1068
    %v1070 = vrot.slane %v1063, %v1069
    %v1071 = vcombine.low %v994, %v1070
    %v1072 = vcombine.high %v994, %v1070
    %v1074 = vunpack.c.l.s4 1983009808
    %v1075 = vunpack.c.0.s8 %v1074
    %v1076 = vlaneseq
    %v1077 = vshrl.u32 %v1076, 7
    %v1078 = vsub.s32 %v1075, %v1077
    %v1079 = vrot.slane %v960, %v1078
    %v1080 = vcombine.high %v1079, %v1079
    %s1087 = smul.u32 8, 96
    %s1088 = smul.u32 %s1087, 2
    %s1089 = sshll.u32 %s1088, 4
    %1090 = dma.done [#allocation4], %s1089
    %v1091 = vld [vmem:[#allocation3] sm:$0xff]
    %v1092 = vld [vmem:[#allocation3 + $0x8] sm:$0xff]
    %v1093 = vld [vmem:[#allocation3 + $0x10] sm:$0xff]
    %v1094 = vld [vmem:[#allocation3 + $0x18] sm:$0xff]
    %v1095 = vld [vmem:[#allocation3 + $0x20] sm:$0xff]
    %v1096 = vld [vmem:[#allocation3 + $0x28] sm:$0xff]
    %v1097 = vld [vmem:[#allocation3 + $0x30] sm:$0xff]
    %v1098 = vld [vmem:[#allocation3 + $0x38] sm:$0xff]
    %v1099 = vld [vmem:[#allocation3 + $0x40] sm:$0xff]
    %v1100 = vld [vmem:[#allocation3 + $0x48] sm:$0xff]
    %v1101 = vld [vmem:[#allocation3 + $0x50] sm:$0xff]
    %v1102 = vld [vmem:[#allocation3 + $0x58] sm:$0xff]
    %v1103 = vld [vmem:[#allocation3 + $0x60] sm:$0xff]
    %v1104 = vld [vmem:[#allocation3 + $0x68] sm:$0xff]
    %v1105 = vld [vmem:[#allocation3 + $0x70] sm:$0xff]
    %v1106 = vld [vmem:[#allocation3 + $0x78] sm:$0xff]
    %v1107 = vld [vmem:[#allocation3 + $0x80] sm:$0xff]
    %v1108 = vld [vmem:[#allocation3 + $0x88] sm:$0xff]
    %v1109 = vld [vmem:[#allocation3 + $0x90] sm:$0xff]
    %v1110 = vld [vmem:[#allocation3 + $0x98] sm:$0xff]
    %v1111 = vld [vmem:[#allocation3 + $0xa0] sm:$0xff]
    %v1112 = vld [vmem:[#allocation3 + $0xa8] sm:$0xff]
    %v1113 = vld [vmem:[#allocation3 + $0xb0] sm:$0xff]
    %v1114 = vld [vmem:[#allocation3 + $0xb8] sm:$0xff]
    %v1115 = vld [vmem:[#allocation3 + $0xc0] sm:$0xff]
    %v1116 = vld [vmem:[#allocation3 + $0xc8] sm:$0xff]
    %v1117 = vld [vmem:[#allocation3 + $0xd0] sm:$0xff]
    %v1118 = vld [vmem:[#allocation3 + $0xd8] sm:$0xff]
    %v1119 = vld [vmem:[#allocation3 + $0xe0] sm:$0xff]
    %v1120 = vld [vmem:[#allocation3 + $0xe8] sm:$0xff]
    %v1121 = vld [vmem:[#allocation3 + $0xf0] sm:$0xff]
    %v1122 = vld [vmem:[#allocation3 + $0xf8] sm:$0xff]
    %v1123 = vld [vmem:[#allocation3 + $0x100] sm:$0xff]
    %v1124 = vld [vmem:[#allocation3 + $0x108] sm:$0xff]
    %v1125 = vld [vmem:[#allocation3 + $0x110] sm:$0xff]
    %v1126 = vld [vmem:[#allocation3 + $0x118] sm:$0xff]
    %v1127 = vld [vmem:[#allocation3 + $0x120] sm:$0xff]
    %v1128 = vld [vmem:[#allocation3 + $0x128] sm:$0xff]
    %v1129 = vld [vmem:[#allocation3 + $0x130] sm:$0xff]
    %v1130 = vld [vmem:[#allocation3 + $0x138] sm:$0xff]
    %v1131 = vld [vmem:[#allocation3 + $0x140] sm:$0xff]
    %v1132 = vld [vmem:[#allocation3 + $0x148] sm:$0xff]
    %v1133 = vld [vmem:[#allocation3 + $0x150] sm:$0xff]
    %v1134 = vld [vmem:[#allocation3 + $0x158] sm:$0xff]
    %v1135 = vld [vmem:[#allocation3 + $0x160] sm:$0xff]
    %v1136 = vld [vmem:[#allocation3 + $0x168] sm:$0xff]
    %v1137 = vld [vmem:[#allocation3 + $0x170] sm:$0xff]
    %v1138 = vld [vmem:[#allocation3 + $0x178] sm:$0xff]
    %v1139 = vld [vmem:[#allocation3 + $0x180] sm:$0xff]
    %v1140 = vld [vmem:[#allocation3 + $0x188] sm:$0xff]
    %v1141 = vld [vmem:[#allocation3 + $0x190] sm:$0xff]
    %v1142 = vld [vmem:[#allocation3 + $0x198] sm:$0xff]
    %v1143 = vld [vmem:[#allocation3 + $0x1a0] sm:$0xff]
    %v1144 = vld [vmem:[#allocation3 + $0x1a8] sm:$0xff]
    %v1145 = vld [vmem:[#allocation3 + $0x1b0] sm:$0xff]
    %v1146 = vld [vmem:[#allocation3 + $0x1b8] sm:$0xff]
    %v1147 = vld [vmem:[#allocation3 + $0x1c0] sm:$0xff]
    %v1148 = vld [vmem:[#allocation3 + $0x1c8] sm:$0xff]
    %v1149 = vld [vmem:[#allocation3 + $0x1d0] sm:$0xff]
    %v1150 = vld [vmem:[#allocation3 + $0x1d8] sm:$0xff]
    %v1151 = vld [vmem:[#allocation3 + $0x1e0] sm:$0xff]
    %v1152 = vld [vmem:[#allocation3 + $0x1e8] sm:$0xff]
    %v1153 = vld [vmem:[#allocation3 + $0x1f0] sm:$0xff]
    %v1154 = vld [vmem:[#allocation3 + $0x1f8] sm:$0xff]
    %v1155 = vld [vmem:[#allocation3 + $0x200] sm:$0xff]
    %v1156 = vld [vmem:[#allocation3 + $0x208] sm:$0xff]
    %v1157 = vld [vmem:[#allocation3 + $0x210] sm:$0xff]
    %v1158 = vld [vmem:[#allocation3 + $0x218] sm:$0xff]
    %v1159 = vld [vmem:[#allocation3 + $0x220] sm:$0xff]
    %v1160 = vld [vmem:[#allocation3 + $0x228] sm:$0xff]
    %v1161 = vld [vmem:[#allocation3 + $0x230] sm:$0xff]
    %v1162 = vld [vmem:[#allocation3 + $0x238] sm:$0xff]
    %v1163 = vld [vmem:[#allocation3 + $0x240] sm:$0xff]
    %v1164 = vld [vmem:[#allocation3 + $0x248] sm:$0xff]
    %v1165 = vld [vmem:[#allocation3 + $0x250] sm:$0xff]
    %v1166 = vld [vmem:[#allocation3 + $0x258] sm:$0xff]
    %v1167 = vld [vmem:[#allocation3 + $0x260] sm:$0xff]
    %v1168 = vld [vmem:[#allocation3 + $0x268] sm:$0xff]
    %v1169 = vld [vmem:[#allocation3 + $0x270] sm:$0xff]
    %v1170 = vld [vmem:[#allocation3 + $0x278] sm:$0xff]
    %v1171 = vld [vmem:[#allocation3 + $0x280] sm:$0xff]
    %v1172 = vld [vmem:[#allocation3 + $0x288] sm:$0xff]
    %v1173 = vld [vmem:[#allocation3 + $0x290] sm:$0xff]
    %v1174 = vld [vmem:[#allocation3 + $0x298] sm:$0xff]
    %v1175 = vld [vmem:[#allocation3 + $0x2a0] sm:$0xff]
    %v1176 = vld [vmem:[#allocation3 + $0x2a8] sm:$0xff]
    %v1177 = vld [vmem:[#allocation3 + $0x2b0] sm:$0xff]
    %v1178 = vld [vmem:[#allocation3 + $0x2b8] sm:$0xff]
    %v1179 = vld [vmem:[#allocation3 + $0x2c0] sm:$0xff]
    %v1180 = vld [vmem:[#allocation3 + $0x2c8] sm:$0xff]
    %v1181 = vld [vmem:[#allocation3 + $0x2d0] sm:$0xff]
    %v1182 = vld [vmem:[#allocation3 + $0x2d8] sm:$0xff]
    %v1183 = vld [vmem:[#allocation3 + $0x2e0] sm:$0xff]
    %v1184 = vld [vmem:[#allocation3 + $0x2e8] sm:$0xff]
    %v1185 = vld [vmem:[#allocation3 + $0x2f0] sm:$0xff]
    %v1186 = vld [vmem:[#allocation3 + $0x2f8] sm:$0xff]
    %v1187 = vld [vmem:[#allocation3 + $0x300] sm:$0xff]
    %v1188 = vld [vmem:[#allocation3 + $0x308] sm:$0xff]
    %v1189 = vld [vmem:[#allocation3 + $0x310] sm:$0xff]
    %v1190 = vld [vmem:[#allocation3 + $0x318] sm:$0xff]
    %v1191 = vld [vmem:[#allocation3 + $0x320] sm:$0xff]
    %v1192 = vld [vmem:[#allocation3 + $0x328] sm:$0xff]
    %v1193 = vld [vmem:[#allocation3 + $0x330] sm:$0xff]
    %v1194 = vld [vmem:[#allocation3 + $0x338] sm:$0xff]
    %v1195 = vld [vmem:[#allocation3 + $0x340] sm:$0xff]
    %v1196 = vld [vmem:[#allocation3 + $0x348] sm:$0xff]
    %v1197 = vld [vmem:[#allocation3 + $0x350] sm:$0xff]
    %v1198 = vld [vmem:[#allocation3 + $0x358] sm:$0xff]
    %v1199 = vld [vmem:[#allocation3 + $0x360] sm:$0xff]
    %v1200 = vld [vmem:[#allocation3 + $0x368] sm:$0xff]
    %v1201 = vld [vmem:[#allocation3 + $0x370] sm:$0xff]
    %v1202 = vld [vmem:[#allocation3 + $0x378] sm:$0xff]
    %v1203 = vld [vmem:[#allocation3 + $0x380] sm:$0xff]
    %v1204 = vld [vmem:[#allocation3 + $0x388] sm:$0xff]
    %v1205 = vld [vmem:[#allocation3 + $0x390] sm:$0xff]
    %v1206 = vld [vmem:[#allocation3 + $0x398] sm:$0xff]
    %v1207 = vld [vmem:[#allocation3 + $0x3a0] sm:$0xff]
    %v1208 = vld [vmem:[#allocation3 + $0x3a8] sm:$0xff]
    %v1209 = vld [vmem:[#allocation3 + $0x3b0] sm:$0xff]
    %v1210 = vld [vmem:[#allocation3 + $0x3b8] sm:$0xff]
    %v1211 = vld [vmem:[#allocation3 + $0x3c0] sm:$0xff]
    %v1212 = vld [vmem:[#allocation3 + $0x3c8] sm:$0xff]
    %v1213 = vld [vmem:[#allocation3 + $0x3d0] sm:$0xff]
    %v1214 = vld [vmem:[#allocation3 + $0x3d8] sm:$0xff]
    %v1215 = vld [vmem:[#allocation3 + $0x3e0] sm:$0xff]
    %v1216 = vld [vmem:[#allocation3 + $0x3e8] sm:$0xff]
    %v1217 = vld [vmem:[#allocation3 + $0x3f0] sm:$0xff]
    %v1218 = vld [vmem:[#allocation3 + $0x3f8] sm:$0xff]
    %v1219 = vld [vmem:[#allocation3 + $0x400] sm:$0xff]
    %v1220 = vld [vmem:[#allocation3 + $0x408] sm:$0xff]
    %v1221 = vld [vmem:[#allocation3 + $0x410] sm:$0xff]
    %v1222 = vld [vmem:[#allocation3 + $0x418] sm:$0xff]
    %v1223 = vld [vmem:[#allocation3 + $0x420] sm:$0xff]
    %v1224 = vld [vmem:[#allocation3 + $0x428] sm:$0xff]
    %v1225 = vld [vmem:[#allocation3 + $0x430] sm:$0xff]
    %v1226 = vld [vmem:[#allocation3 + $0x438] sm:$0xff]
    %v1227 = vld [vmem:[#allocation3 + $0x440] sm:$0xff]
    %v1228 = vld [vmem:[#allocation3 + $0x448] sm:$0xff]
    %v1229 = vld [vmem:[#allocation3 + $0x450] sm:$0xff]
    %v1230 = vld [vmem:[#allocation3 + $0x458] sm:$0xff]
    %v1231 = vld [vmem:[#allocation3 + $0x460] sm:$0xff]
    %v1232 = vld [vmem:[#allocation3 + $0x468] sm:$0xff]
    %v1233 = vld [vmem:[#allocation3 + $0x470] sm:$0xff]
    %v1234 = vld [vmem:[#allocation3 + $0x478] sm:$0xff]
    %v1235 = vld [vmem:[#allocation3 + $0x480] sm:$0xff]
    %v1236 = vld [vmem:[#allocation3 + $0x488] sm:$0xff]
    %v1237 = vld [vmem:[#allocation3 + $0x490] sm:$0xff]
    %v1238 = vld [vmem:[#allocation3 + $0x498] sm:$0xff]
    %v1239 = vld [vmem:[#allocation3 + $0x4a0] sm:$0xff]
    %v1240 = vld [vmem:[#allocation3 + $0x4a8] sm:$0xff]
    %v1241 = vld [vmem:[#allocation3 + $0x4b0] sm:$0xff]
    %v1242 = vld [vmem:[#allocation3 + $0x4b8] sm:$0xff]
    %v1243 = vld [vmem:[#allocation3 + $0x4c0] sm:$0xff]
    %v1244 = vld [vmem:[#allocation3 + $0x4c8] sm:$0xff]
    %v1245 = vld [vmem:[#allocation3 + $0x4d0] sm:$0xff]
    %v1246 = vld [vmem:[#allocation3 + $0x4d8] sm:$0xff]
    %v1247 = vld [vmem:[#allocation3 + $0x4e0] sm:$0xff]
    %v1248 = vld [vmem:[#allocation3 + $0x4e8] sm:$0xff]
    %v1249 = vld [vmem:[#allocation3 + $0x4f0] sm:$0xff]
    %v1250 = vld [vmem:[#allocation3 + $0x4f8] sm:$0xff]
    %v1251 = vld [vmem:[#allocation3 + $0x500] sm:$0xff]
    %v1252 = vld [vmem:[#allocation3 + $0x508] sm:$0xff]
    %v1253 = vld [vmem:[#allocation3 + $0x510] sm:$0xff]
    %v1254 = vld [vmem:[#allocation3 + $0x518] sm:$0xff]
    %v1255 = vld [vmem:[#allocation3 + $0x520] sm:$0xff]
    %v1256 = vld [vmem:[#allocation3 + $0x528] sm:$0xff]
    %v1257 = vld [vmem:[#allocation3 + $0x530] sm:$0xff]
    %v1258 = vld [vmem:[#allocation3 + $0x538] sm:$0xff]
    %v1259 = vld [vmem:[#allocation3 + $0x540] sm:$0xff]
    %v1260 = vld [vmem:[#allocation3 + $0x548] sm:$0xff]
    %v1261 = vld [vmem:[#allocation3 + $0x550] sm:$0xff]
    %v1262 = vld [vmem:[#allocation3 + $0x558] sm:$0xff]
    %v1263 = vld [vmem:[#allocation3 + $0x560] sm:$0xff]
    %v1264 = vld [vmem:[#allocation3 + $0x568] sm:$0xff]
    %v1265 = vld [vmem:[#allocation3 + $0x570] sm:$0xff]
    %v1266 = vld [vmem:[#allocation3 + $0x578] sm:$0xff]
    %v1267 = vld [vmem:[#allocation3 + $0x580] sm:$0xff]
    %v1268 = vld [vmem:[#allocation3 + $0x588] sm:$0xff]
    %v1269 = vld [vmem:[#allocation3 + $0x590] sm:$0xff]
    %v1270 = vld [vmem:[#allocation3 + $0x598] sm:$0xff]
    %v1271 = vld [vmem:[#allocation3 + $0x5a0] sm:$0xff]
    %v1272 = vld [vmem:[#allocation3 + $0x5a8] sm:$0xff]
    %v1273 = vld [vmem:[#allocation3 + $0x5b0] sm:$0xff]
    %v1274 = vld [vmem:[#allocation3 + $0x5b8] sm:$0xff]
    %v1275 = vld [vmem:[#allocation3 + $0x5c0] sm:$0xff]
    %v1276 = vld [vmem:[#allocation3 + $0x5c8] sm:$0xff]
    %v1277 = vld [vmem:[#allocation3 + $0x5d0] sm:$0xff]
    %v1278 = vld [vmem:[#allocation3 + $0x5d8] sm:$0xff]
    %v1279 = vld [vmem:[#allocation3 + $0x5e0] sm:$0xff]
    %v1280 = vld [vmem:[#allocation3 + $0x5e8] sm:$0xff]
    %v1281 = vld [vmem:[#allocation3 + $0x5f0] sm:$0xff]
    %v1282 = vld [vmem:[#allocation3 + $0x5f8] sm:$0xff]
    %1283 = vmatprep.subr.mxu0 %v1092
    %1284 = vmatpush1.msra.mxu0 %v1091
    %1285 = vmatprep.subr.mxu0 %v1094
    %1286 = vmatpush1.msra.mxu0 %v1093
    %1287 = vmatprep.subr.mxu0 %v1096
    %1288 = vmatpush1.msra.mxu0 %v1095
    %1289 = vmatprep.subr.mxu0 %v1098
    %1290 = vmatpush1.msra.mxu0 %v1097
    %1291 = vmatprep.subr.mxu0 %v1100
    %1292 = vmatpush1.msra.mxu0 %v1099
    %1293 = vmatprep.subr.mxu0 %v1102
    %1294 = vmatpush1.msra.mxu0 %v1101
    %1295 = vmatprep.subr.mxu0 %v1104
    %1296 = vmatpush1.msra.mxu0 %v1103
    %1297 = vmatprep.subr.mxu0 %v1106
    %1298 = vmatpush1.msra.mxu0 %v1105
    %1299 = vmatprep.subr.mxu0 %v1108
    %1300 = vmatpush1.msra.mxu0 %v1107
    %1301 = vmatprep.subr.mxu0 %v1110
    %1302 = vmatpush1.msra.mxu0 %v1109
    %1303 = vmatprep.subr.mxu0 %v1112
    %1304 = vmatpush1.msra.mxu0 %v1111
    %1305 = vmatprep.subr.mxu0 %v1114
    %1306 = vmatpush1.msra.mxu0 %v1113
    %1307 = vmatprep.subr.mxu0 %v1116
    %1308 = vmatpush1.msra.mxu0 %v1115
    %1309 = vmatprep.subr.mxu0 %v1118
    %1310 = vmatpush1.msra.mxu0 %v1117
    %1311 = vmatprep.subr.mxu0 %v1120
    %1312 = vmatpush1.msra.mxu0 %v1119
    %1313 = vmatprep.subr.mxu0 %v1122
    %1314 = vmatpush1.msra.mxu0 %v1121
    %1315 = vmatprep.subr.mxu0 %v1124
    %1316 = vmatpush1.msra.mxu0 %v1123
    %1317 = vmatprep.subr.mxu0 %v1126
    %1318 = vmatpush1.msra.mxu0 %v1125
    %1319 = vmatprep.subr.mxu0 %v1128
    %1320 = vmatpush1.msra.mxu0 %v1127
    %1321 = vmatprep.subr.mxu0 %v1130
    %1322 = vmatpush1.msra.mxu0 %v1129
    %1323 = vmatprep.subr.mxu0 %v1132
    %1324 = vmatpush1.msra.mxu0 %v1131
    %1325 = vmatprep.subr.mxu0 %v1134
    %1326 = vmatpush1.msra.mxu0 %v1133
    %1327 = vmatprep.subr.mxu0 %v1136
    %1328 = vmatpush1.msra.mxu0 %v1135
    %1329 = vmatprep.subr.mxu0 %v1138
    %1330 = vmatpush1.msra.mxu0 %v1137
    %1331 = vmatprep.subr.mxu0 %v1140
    %1332 = vmatpush1.msra.mxu0 %v1139
    %1333 = vmatprep.subr.mxu0 %v1142
    %1334 = vmatpush1.msra.mxu0 %v1141
    %1335 = vmatprep.subr.mxu0 %v1144
    %1336 = vmatpush1.msra.mxu0 %v1143
    %1337 = vmatprep.subr.mxu0 %v1146
    %1338 = vmatpush1.msra.mxu0 %v1145
    %1339 = vmatprep.subr.mxu0 %v1148
    %1340 = vmatpush1.msra.mxu0 %v1147
    %1341 = vmatprep.subr.mxu0 %v1150
    %1342 = vmatpush1.msra.mxu0 %v1149
    %1343 = vmatprep.subr.mxu0 %v1152
    %1344 = vmatpush1.msra.mxu0 %v1151
    %1345 = vmatprep.subr.mxu0 %v1154
    %1346 = vmatpush1.msra.mxu0 %v1153
    %1347 = vmatprep.mubr.f32.mxu0 %v978
    %1348 = vmatmul.mubr.f32.gmra.mrb[0].mxu0 %v977
    %v1349 = vpop.f32.mrb[0].mxu0
    %v1350 = vadd.f32 0.0, %v1349
    %v1351 = vpop.f32.mrb[0].mxu0
    %v1352 = vadd.f32 0.0, %v1351
    %1353 = vmatprep.mubr.f32.mxu0 %v996
    %1354 = vmatmul.mubr.f32.gmra.mrb[0].mxu0 %v995
    %v1355 = vpop.f32.mrb[0].mxu0
    %v1356 = vadd.f32 0.0, %v1355
    %v1357 = vpop.f32.mrb[0].mxu0
    %v1358 = vadd.f32 0.0, %v1357
    %1359 = vmatprep.mubr.f32.mxu0 %v1004
    %1360 = vmatmul.mubr.f32.gmra.mrb[0].mxu0 %v1003
    %v1361 = vpop.f32.mrb[0].mxu0
    %v1362 = vadd.f32 0.0, %v1361
    %v1363 = vpop.f32.mrb[0].mxu0
    %v1364 = vadd.f32 0.0, %v1363
    %1365 = vdwg.mxu0
    %1366 = vmatprep.subr.mxu0 %v1156
    %1367 = vmatpush1.msra.mxu0 %v1155
    %1368 = vmatprep.subr.mxu0 %v1158
    %1369 = vmatpush1.msra.mxu0 %v1157
    %1370 = vmatprep.subr.mxu0 %v1160
    %1371 = vmatpush1.msra.mxu0 %v1159
    %1372 = vmatprep.subr.mxu0 %v1162
    %1373 = vmatpush1.msra.mxu0 %v1161
    %1374 = vmatprep.subr.mxu0 %v1164
    %1375 = vmatpush1.msra.mxu0 %v1163
    %1376 = vmatprep.subr.mxu0 %v1166
    %1377 = vmatpush1.msra.mxu0 %v1165
    %1378 = vmatprep.subr.mxu0 %v1168
    %1379 = vmatpush1.msra.mxu0 %v1167
    %1380 = vmatprep.subr.mxu0 %v1170
    %1381 = vmatpush1.msra.mxu0 %v1169
    %1382 = vmatprep.subr.mxu0 %v1172
    %1383 = vmatpush1.msra.mxu0 %v1171
    %1384 = vmatprep.subr.mxu0 %v1174
    %1385 = vmatpush1.msra.mxu0 %v1173
    %1386 = vmatprep.subr.mxu0 %v1176
    %1387 = vmatpush1.msra.mxu0 %v1175
    %1388 = vmatprep.subr.mxu0 %v1178
    %1389 = vmatpush1.msra.mxu0 %v1177
    %1390 = vmatprep.subr.mxu0 %v1180
    %1391 = vmatpush1.msra.mxu0 %v1179
    %1392 = vmatprep.subr.mxu0 %v1182
    %1393 = vmatpush1.msra.mxu0 %v1181
    %1394 = vmatprep.subr.mxu0 %v1184
    %1395 = vmatpush1.msra.mxu0 %v1183
    %1396 = vmatprep.subr.mxu0 %v1186
    %1397 = vmatpush1.msra.mxu0 %v1185
    %1398 = vmatprep.subr.mxu0 %v1188
    %1399 = vmatpush1.msra.mxu0 %v1187
    %1400 = vmatprep.subr.mxu0 %v1190
    %1401 = vmatpush1.msra.mxu0 %v1189
    %1402 = vmatprep.subr.mxu0 %v1192
    %1403 = vmatpush1.msra.mxu0 %v1191
    %1404 = vmatprep.subr.mxu0 %v1194
    %1405 = vmatpush1.msra.mxu0 %v1193
    %1406 = vmatprep.subr.mxu0 %v1196
    %1407 = vmatpush1.msra.mxu0 %v1195
    %1408 = vmatprep.subr.mxu0 %v1198
    %1409 = vmatpush1.msra.mxu0 %v1197
    %1410 = vmatprep.subr.mxu0 %v1200
    %1411 = vmatpush1.msra.mxu0 %v1199
    %1412 = vmatprep.subr.mxu0 %v1202
    %1413 = vmatpush1.msra.mxu0 %v1201
    %1414 = vmatprep.subr.mxu0 %v1204
    %1415 = vmatpush1.msra.mxu0 %v1203
    %1416 = vmatprep.subr.mxu0 %v1206
    %1417 = vmatpush1.msra.mxu0 %v1205
    %1418 = vmatprep.subr.mxu0 %v1208
    %1419 = vmatpush1.msra.mxu0 %v1207
    %1420 = vmatprep.subr.mxu0 %v1210
    %1421 = vmatpush1.msra.mxu0 %v1209
    %1422 = vmatprep.subr.mxu0 %v1212
    %1423 = vmatpush1.msra.mxu0 %v1211
    %1424 = vmatprep.subr.mxu0 %v1214
    %1425 = vmatpush1.msra.mxu0 %v1213
    %1426 = vmatprep.subr.mxu0 %v1216
    %1427 = vmatpush1.msra.mxu0 %v1215
    %1428 = vmatprep.subr.mxu0 %v1218
    %1429 = vmatpush1.msra.mxu0 %v1217
    %1430 = vmatprep.mubr.f32.mxu0 %v1028
    %1431 = vmatmul.mubr.f32.gmra.mrb[0].mxu0 %v1027
    %v1432 = vpop.f32.mrb[0].mxu0
    %v1433 = vadd.f32 %v1350, %v1432
    %v1434 = vpop.f32.mrb[0].mxu0
    %v1435 = vadd.f32 %v1352, %v1434
    %1436 = vmatprep.mubr.f32.mxu0 %v1046
    %1437 = vmatmul.mubr.f32.gmra.mrb[0].mxu0 %v1045
    %v1438 = vpop.f32.mrb[0].mxu0
    %v1439 = vadd.f32 %v1356, %v1438
    %v1440 = vpop.f32.mrb[0].mxu0
    %v1441 = vadd.f32 %v1358, %v1440
    %1442 = vmatprep.mubr.f32.mxu0 %v1054
    %1443 = vmatmul.mubr.f32.gmra.mrb[0].mxu0 %v1053
    %v1444 = vpop.f32.mrb[0].mxu0
    %v1445 = vadd.f32 %v1362, %v1444
    %v1446 = vpop.f32.mrb[0].mxu0
    %v1447 = vadd.f32 %v1364, %v1446
    %1448 = vdwg.mxu0
    %1449 = vmatprep.subr.mxu0 %v1220
    %1450 = vmatpush1.msra.mxu0 %v1219
    %1451 = vmatprep.subr.mxu0 %v1222
    %1452 = vmatpush1.msra.mxu0 %v1221
    %1453 = vmatprep.subr.mxu0 %v1224
    %1454 = vmatpush1.msra.mxu0 %v1223
    %1455 = vmatprep.subr.mxu0 %v1226
    %1456 = vmatpush1.msra.mxu0 %v1225
    %1457 = vmatprep.subr.mxu0 %v1228
    %1458 = vmatpush1.msra.mxu0 %v1227
    %1459 = vmatprep.subr.mxu0 %v1230
    %1460 = vmatpush1.msra.mxu0 %v1229
    %1461 = vmatprep.subr.mxu0 %v1232
    %1462 = vmatpush1.msra.mxu0 %v1231
    %1463 = vmatprep.subr.mxu0 %v1234
    %1464 = vmatpush1.msra.mxu0 %v1233
    %1465 = vmatprep.subr.mxu0 %v1236
    %1466 = vmatpush1.msra.mxu0 %v1235
    %1467 = vmatprep.subr.mxu0 %v1238
    %1468 = vmatpush1.msra.mxu0 %v1237
    %1469 = vmatprep.subr.mxu0 %v1240
    %1470 = vmatpush1.msra.mxu0 %v1239
    %1471 = vmatprep.subr.mxu0 %v1242
    %1472 = vmatpush1.msra.mxu0 %v1241
    %1473 = vmatprep.subr.mxu0 %v1244
    %1474 = vmatpush1.msra.mxu0 %v1243
    %1475 = vmatprep.subr.mxu0 %v1246
    %1476 = vmatpush1.msra.mxu0 %v1245
    %1477 = vmatprep.subr.mxu0 %v1248
    %1478 = vmatpush1.msra.mxu0 %v1247
    %1479 = vmatprep.subr.mxu0 %v1250
    %1480 = vmatpush1.msra.mxu0 %v1249
    %1481 = vmatprep.subr.mxu0 %v1252
    %1482 = vmatpush1.msra.mxu0 %v1251
    %1483 = vmatprep.subr.mxu0 %v1254
    %1484 = vmatpush1.msra.mxu0 %v1253
    %1485 = vmatprep.subr.mxu0 %v1256
    %1486 = vmatpush1.msra.mxu0 %v1255
    %1487 = vmatprep.subr.mxu0 %v1258
    %1488 = vmatpush1.msra.mxu0 %v1257
    %1489 = vmatprep.subr.mxu0 %v1260
    %1490 = vmatpush1.msra.mxu0 %v1259
    %1491 = vmatprep.subr.mxu0 %v1262
    %1492 = vmatpush1.msra.mxu0 %v1261
    %1493 = vmatprep.subr.mxu0 %v1264
    %1494 = vmatpush1.msra.mxu0 %v1263
    %1495 = vmatprep.subr.mxu0 %v1266
    %1496 = vmatpush1.msra.mxu0 %v1265
    %1497 = vmatprep.subr.mxu0 %v1268
    %1498 = vmatpush1.msra.mxu0 %v1267
    %1499 = vmatprep.subr.mxu0 %v1270
    %1500 = vmatpush1.msra.mxu0 %v1269
    %1501 = vmatprep.subr.mxu0 %v1272
    %1502 = vmatpush1.msra.mxu0 %v1271
    %1503 = vmatprep.subr.mxu0 %v1274
    %1504 = vmatpush1.msra.mxu0 %v1273
    %1505 = vmatprep.subr.mxu0 %v1276
    %1506 = vmatpush1.msra.mxu0 %v1275
    %1507 = vmatprep.subr.mxu0 %v1278
    %1508 = vmatpush1.msra.mxu0 %v1277
    %1509 = vmatprep.subr.mxu0 %v1280
    %1510 = vmatpush1.msra.mxu0 %v1279
    %1511 = vmatprep.subr.mxu0 %v1282
    %1512 = vmatpush1.msra.mxu0 %v1281
    %1513 = vmatprep.mubr.f32.mxu0 %v1062
    %1514 = vmatmul.mubr.f32.gmra.mrb[0].mxu0 %v1061
    %v1515 = vpop.f32.mrb[0].mxu0
    %v1516 = vadd.f32 %v1433, %v1515
    %v1517 = vpop.f32.mrb[0].mxu0
    %v1518 = vadd.f32 %v1435, %v1517
    %1519 = vmatprep.mubr.f32.mxu0 %v1072
    %1520 = vmatmul.mubr.f32.gmra.mrb[0].mxu0 %v1071
    %v1521 = vpop.f32.mrb[0].mxu0
    %v1522 = vadd.f32 %v1439, %v1521
    %v1523 = vpop.f32.mrb[0].mxu0
    %v1524 = vadd.f32 %v1441, %v1523
    %1525 = vmatprep.mubr.f32.mxu0 %v1080
    %1526 = vmatmul.mubr.f32.gmra.mrb[0].mxu0 %v1079
    %v1527 = vpop.f32.mrb[0].mxu0
    %v1528 = vadd.f32 %v1445, %v1527
    %v1529 = vpop.f32.mrb[0].mxu0
    %v1530 = vadd.f32 %v1447, %v1529
    %1531 = vdwg.mxu0
    %v1532 = vadd.f32 %v1516, %v1522
    %v1533 = vsel %vm414, %v1528, 0.0
    %v1534 = vadd.f32 %v1532, %v1533
    %v1535 = vrot.slane %v1534, 4
    %v1536 = vadd.f32 %v1534, %v1535
    %v1537 = vrot.slane %v1536, 2
    %v1538 = vadd.f32 %v1536, %v1537
    %v1539 = vrot.slane %v1538, 1
    %v1540 = vadd.f32 %v1538, %v1539
    %v1541 = vadd.f32 %v1518, %v1524
    %v1542 = vsel %vm414, %v1530, 0.0
    %v1543 = vadd.f32 %v1541, %v1542
    %v1544 = vrot.slane %v1543, 4
    %v1545 = vadd.f32 %v1543, %v1544
    %v1546 = vrot.slane %v1545, 2
    %v1547 = vadd.f32 %v1545, %v1546
    %v1548 = vrot.slane %v1547, 1
    %v1549 = vadd.f32 %v1547, %v1548
    %v1550 = vadd.f32 %v1540, 0.0
    %v1551 = vadd.f32 %v1549, 0.0
    %v1552 = vmul.f32 %v1550, 0.055555556
    %v1553 = vmul.f32 %v1551, 0.055555556
    %v1554 = vsub.f32 %v1516, %v1552
    %v1555 = vsub.f32 %v1518, %v1553
    %v1556 = vsub.f32 %v1522, %v1552
    %v1557 = vsub.f32 %v1524, %v1553
    %v1558 = vsub.f32 %v1528, %v1552
    %v1559 = vsub.f32 %v1530, %v1553
    %v1560 = vmul.f32 %v1554, %v1554
    %v1561 = vmul.f32 %v1555, %v1555
    %v1562 = vmul.f32 %v1556, %v1556
    %v1563 = vmul.f32 %v1557, %v1557
    %v1564 = vmul.f32 %v1558, %v1558
    %v1565 = vmul.f32 %v1559, %v1559
    %v1566 = vadd.f32 %v1560, %v1562
    %v1567 = vsel %vm414, %v1564, 0.0
    %v1568 = vadd.f32 %v1566, %v1567
    %v1569 = vrot.slane %v1568, 4
    %v1570 = vadd.f32 %v1568, %v1569
    %v1571 = vrot.slane %v1570, 2
    %v1572 = vadd.f32 %v1570, %v1571
    %v1573 = vrot.slane %v1572, 1
    %v1574 = vadd.f32 %v1572, %v1573
    %v1575 = vadd.f32 %v1561, %v1563
    %v1576 = vsel %vm414, %v1565, 0.0
    %v1577 = vadd.f32 %v1575, %v1576
    %v1578 = vrot.slane %v1577, 4
    %v1579 = vadd.f32 %v1577, %v1578
    %v1580 = vrot.slane %v1579, 2
    %v1581 = vadd.f32 %v1579, %v1580
    %v1582 = vrot.slane %v1581, 1
    %v1583 = vadd.f32 %v1581, %v1582
    %v1584 = vadd.f32 %v1574, 0.0
    %v1585 = vadd.f32 %v1583, 0.0
    %v1586 = vmul.f32 %v1584, 0.055555556
    %v1587 = vmul.f32 %v1585, 0.055555556
    %v1588 = vadd.f32 %v1586, 1e-05
    %v1589 = vadd.f32 %v1587, 1e-05
    %v1590 = vrsqrt.pop %v1588
    %v1591 = vrsqrt.pop %v1589
    %v1592 = vld [vmem:[%s5] sm:$0x3]
    %v1594 = vlaneseq
    %v1595 = vshrl.u32 %v1594, 7
    %v1596 = vsub.s32 0, %v1595
    %v1597 = vrot.slane %v1592, %v1596
    %v1598 = vlaneseq
    %v1599 = vshrl.u32 %v1598, 7
    %v1600 = vsub.s32 1, %v1599
    %v1601 = vrot.slane %v1592, %v1600
    %v1604 = vmul.f32 %v1590, %v1597
    %v1605 = vmul.f32 %v1591, %v1601
    %v1606 = vlaneseq
    %v1607 = vshrl.u32 %v1606, 7
    %v1608 = vsub.s32 0, %v1607
    %v1609 = vrot.slane %v1604, %v1608
    %v1610 = vlaneseq
    %v1611 = vshrl.u32 %v1610, 7
    %v1612 = vsub.s32 0, %v1611
    %v1613 = vrot.slane %v1605, %v1612
    %v1614 = vmul.f32 %v1554, %v1609
    %v1615 = vmul.f32 %v1555, %v1613
    %v1616 = vmul.f32 %v1556, %v1609
    %v1617 = vmul.f32 %v1557, %v1613
    %v1618 = vld [vmem:[%s6] sm:$0x3]
    %v1620 = vlaneseq
    %v1621 = vshrl.u32 %v1620, 7
    %v1622 = vsub.s32 0, %v1621
    %v1623 = vrot.slane %v1618, %v1622
    %v1624 = vlaneseq
    %v1625 = vshrl.u32 %v1624, 7
    %v1626 = vsub.s32 1, %v1625
    %v1627 = vrot.slane %v1618, %v1626
    %v1630 = vadd.f32 %v1614, %v1623
    %v1631 = vadd.f32 %v1615, %v1627
    %v1632 = vadd.f32 %v1616, %v1623
    %v1633 = vadd.f32 %v1617, %v1627
    %v1638 = vrot.slane %v1630, 2
    %v1639 = vrot.slane %v1631, 2
    %v1640 = vrot.slane %v1632, 2
    %v1641 = vrot.slane %v1633, 2
    %v1646 = vmax.f32 %v1630, %v1638
    %v1647 = vmax.f32 %v1631, %v1639
    %v1648 = vmax.f32 %v1632, %v1640
    %v1649 = vmax.f32 %v1633, %v1641
    %v1650 = vrot.slane %v1630, 4
    %v1651 = vrot.slane %v1631, 4
    %v1652 = vrot.slane %v1632, 4
    %v1653 = vrot.slane %v1633, 4
    %v1658 = vmax.f32 %v1646, %v1650
    %v1659 = vmax.f32 %v1647, %v1651
    %v1660 = vmax.f32 %v1648, %v1652
    %v1661 = vmax.f32 %v1649, %v1653
    %v1662 = vrot.slane %v1630, 6
    %v1663 = vrot.slane %v1631, 6
    %v1664 = vrot.slane %v1632, 6
    %v1665 = vrot.slane %v1633, 6
    %v1670 = vmax.f32 %v1658, %v1662
    %v1671 = vmax.f32 %v1659, %v1663
    %v1672 = vmax.f32 %v1660, %v1664
    %v1673 = vmax.f32 %v1661, %v1665
    %v1678 = vcombine.low %v1670, %v1671
    %v1680 = vunpack.c.l.s4 1983009808
    %v1681 = vunpack.c.0.s8 %v1680
    %v1682 = vlaneseq
    %v1683 = vshrl.u32 %v1682, 7
    %v1684 = vsub.s32 %v1681, %v1683
    %v1685 = vrot.slane %v1678, %v1684
    %v1686 = vcombine.low %v1672, %v1673
    %v1688 = vunpack.c.l.s4 1983009808
    %v1689 = vunpack.c.0.s8 %v1688
    %v1690 = vlaneseq
    %v1691 = vshrl.u32 %v1690, 7
    %v1692 = vsub.s32 %v1689, %v1691
    %v1693 = vrot.slane %v1686, %v1692
    %v1696 = vadd.f32 %v1685, %v1693
    %v1697 = vmul.f32 %v1696, 0.5
    %v1698 = vld [vmem:[#allocation8] sm:$0xff]
    %v1699 = vld [vmem:[#allocation8 + $0x8] sm:$0xff]
    %v1700 = vld [vmem:[#allocation8 + $0x10] sm:$0xff]
    %v1701 = vld [vmem:[#allocation8 + $0x18] sm:$0xff]
    %v1702 = vld [vmem:[#allocation8 + $0x20] sm:$0xff]
    %v1703 = vld [vmem:[#allocation8 + $0x28] sm:$0xff]
    %v1704 = vld [vmem:[#allocation8 + $0x30] sm:$0xff]
    %v1705 = vld [vmem:[#allocation8 + $0x38] sm:$0xff]
    %v1706 = vld [vmem:[#allocation8 + $0x40] sm:$0xff]
    %v1707 = vld [vmem:[#allocation8 + $0x48] sm:$0xff]
    %v1708 = vld [vmem:[#allocation8 + $0x50] sm:$0xff]
    %v1709 = vld [vmem:[#allocation8 + $0x58] sm:$0xff]
    %v1710 = vld [vmem:[#allocation8 + $0x60] sm:$0xff]
    %v1711 = vld [vmem:[#allocation8 + $0x68] sm:$0xff]
    %v1712 = vld [vmem:[#allocation8 + $0x70] sm:$0xff]
    %v1713 = vld [vmem:[#allocation8 + $0x78] sm:$0xff]
    %v1714 = vld [vmem:[#allocation8 + $0x80] sm:$0xff]
    %v1715 = vld [vmem:[#allocation8 + $0x88] sm:$0xff]
    %v1716 = vld [vmem:[#allocation8 + $0x90] sm:$0xff]
    %v1717 = vld [vmem:[#allocation8 + $0x98] sm:$0xff]
    %v1718 = vld [vmem:[#allocation8 + $0xa0] sm:$0xff]
    %v1719 = vld [vmem:[#allocation8 + $0xa8] sm:$0xff]
    %v1720 = vld [vmem:[#allocation8 + $0xb0] sm:$0xff]
    %v1721 = vld [vmem:[#allocation8 + $0xb8] sm:$0xff]
    %v1722 = vld [vmem:[#allocation8 + $0xc0] sm:$0xff]
    %v1723 = vld [vmem:[#allocation8 + $0xc8] sm:$0xff]
    %v1724 = vld [vmem:[#allocation8 + $0xd0] sm:$0xff]
    %v1725 = vld [vmem:[#allocation8 + $0xd8] sm:$0xff]
    %v1726 = vld [vmem:[#allocation8 + $0xe0] sm:$0xff]
    %v1727 = vld [vmem:[#allocation8 + $0xe8] sm:$0xff]
    %v1728 = vld [vmem:[#allocation8 + $0xf0] sm:$0xff]
    %v1729 = vld [vmem:[#allocation8 + $0xf8] sm:$0xff]
    %v1730 = vld [vmem:[%s8] sm:$0x1]
    %v1732 = vlaneseq
    %v1733 = vshrl.u32 %v1732, 7
    %v1734 = vsub.s32 0, %v1733
    %v1735 = vrot.slane %v1730, %v1734
    %v1739 = vunpack.c.l.s4 1983009808
    %v1740 = vunpack.c.0.s8 %v1739
    %v1741 = vlaneseq
    %v1742 = vshrl.u32 %v1741, 7
    %v1743 = vsub.s32 %v1740, %v1742
    %v1744 = vrot.slane %v1697, %v1743
    %v1745 = vcombine.high %v1744, %v1744
    %1748 = vmatprep.subr.mxu0 0.0
    %1749 = vmatpush1.msra.mxu0 %v1698
    %1750 = vmatprep.subr.mxu0 0.0
    %1751 = vmatpush1.msra.mxu0 %v1699
    %1752 = vmatprep.subr.mxu0 0.0
    %1753 = vmatpush1.msra.mxu0 %v1700
    %1754 = vmatprep.subr.mxu0 0.0
    %1755 = vmatpush1.msra.mxu0 %v1701
    %1756 = vmatprep.subr.mxu0 0.0
    %1757 = vmatpush1.msra.mxu0 %v1702
    %1758 = vmatprep.subr.mxu0 0.0
    %1759 = vmatpush1.msra.mxu0 %v1703
    %1760 = vmatprep.subr.mxu0 0.0
    %1761 = vmatpush1.msra.mxu0 %v1704
    %1762 = vmatprep.subr.mxu0 0.0
    %1763 = vmatpush1.msra.mxu0 %v1705
    %1764 = vmatprep.subr.mxu0 0.0
    %1765 = vmatpush1.msra.mxu0 %v1706
    %1766 = vmatprep.subr.mxu0 0.0
    %1767 = vmatpush1.msra.mxu0 %v1707
    %1768 = vmatprep.subr.mxu0 0.0
    %1769 = vmatpush1.msra.mxu0 %v1708
    %1770 = vmatprep.subr.mxu0 0.0
    %1771 = vmatpush1.msra.mxu0 %v1709
    %1772 = vmatprep.subr.mxu0 0.0
    %1773 = vmatpush1.msra.mxu0 %v1710
    %1774 = vmatprep.subr.mxu0 0.0
    %1775 = vmatpush1.msra.mxu0 %v1711
    %1776 = vmatprep.subr.mxu0 0.0
    %1777 = vmatpush1.msra.mxu0 %v1712
    %1778 = vmatprep.subr.mxu0 0.0
    %1779 = vmatpush1.msra.mxu0 %v1713
    %1780 = vmatprep.subr.mxu0 0.0
    %1781 = vmatpush1.msra.mxu0 %v1714
    %1782 = vmatprep.subr.mxu0 0.0
    %1783 = vmatpush1.msra.mxu0 %v1715
    %1784 = vmatprep.subr.mxu0 0.0
    %1785 = vmatpush1.msra.mxu0 %v1716
    %1786 = vmatprep.subr.mxu0 0.0
    %1787 = vmatpush1.msra.mxu0 %v1717
    %1788 = vmatprep.subr.mxu0 0.0
    %1789 = vmatpush1.msra.mxu0 %v1718
    %1790 = vmatprep.subr.mxu0 0.0
    %1791 = vmatpush1.msra.mxu0 %v1719
    %1792 = vmatprep.subr.mxu0 0.0
    %1793 = vmatpush1.msra.mxu0 %v1720
    %1794 = vmatprep.subr.mxu0 0.0
    %1795 = vmatpush1.msra.mxu0 %v1721
    %1796 = vmatprep.subr.mxu0 0.0
    %1797 = vmatpush1.msra.mxu0 %v1722
    %1798 = vmatprep.subr.mxu0 0.0
    %1799 = vmatpush1.msra.mxu0 %v1723
    %1800 = vmatprep.subr.mxu0 0.0
    %1801 = vmatpush1.msra.mxu0 %v1724
    %1802 = vmatprep.subr.mxu0 0.0
    %1803 = vmatpush1.msra.mxu0 %v1725
    %1804 = vmatprep.subr.mxu0 0.0
    %1805 = vmatpush1.msra.mxu0 %v1726
    %1806 = vmatprep.subr.mxu0 0.0
    %1807 = vmatpush1.msra.mxu0 %v1727
    %1808 = vmatprep.subr.mxu0 0.0
    %1809 = vmatpush1.msra.mxu0 %v1728
    %1810 = vmatprep.subr.mxu0 0.0
    %1811 = vmatpush1.msra.mxu0 %v1729
    %1812 = vmatprep.mubr.f32.mxu0 %v1745
    %1813 = vmatmul.mubr.f32.gmra.mrb[0].mxu0 %v1744
    %v1814 = vpop.f32.mrb[0].mxu0
    %v1815 = vadd.f32 %v1735, %v1814
    %v1816 = vpop.f32.mrb[0].mxu0
    %1817 = vdwg.mxu0
    %1818 = vst [vmem:[#allocation10] sm:$0x3] %v1815
    // Predicated region
    $region46: #{m3_forward.1} parent=1 // pred_check
      _
    $region47: #{m3_forward.1} parent=1 // pred_check_branch
      %1820 = sbr.rel (0) target = $region49
    $region48: #{m3_forward.1} parent=1 // pred_region
      %s1822 = ssub.s32 32, 32
      %1823 = vsyncadd [#allocation7], %s1822
      %s1825 = sshll.u32 [#allocation10], 4
      %s1826 = int_to_ptr.vmem [resolvable:$true] %s1825
      %1828 = dma.vmem_to_hbm [thread:$0]  %s1826, 32, %s9, [#allocation7]
    $region49: #{m3_forward.1} parent=1 // pred_fallthru
      _
    // Predicated region
    $region50: #{m3_forward.1} parent=1 // pred_check
      _
    $region51: #{m3_forward.1} parent=1 // pred_check_branch
      %1830 = sbr.rel (0) target = $region53
    $region52: #{m3_forward.1} parent=1 // pred_region
      %1831 = dma.done [#allocation7], 32
    $region53: #{m3_forward.1} parent=1 // pred_fallthru
      _
    %1832 = vsyncpa [#allocation6], 1
    %1833 = vsyncpa [#allocation9], 1
    %1834 = vsyncpa [#allocation7], 1
  %1835 = vsyncmov [#allocation4]
  %s1836 = vpop.sfrf %1835
  %p1837 = scmp.eq.s32.totalorder %s1836, 0
  %p1838 = pneg %p1837
  %1840 = shalt.err (%p1838)

</llo_original>
